<compile_context>
chip_gen: v7x
topology: tpu7x:2x2x1
jax: 0.10.0
libtpu: 0.0.40
codegen_flags: <defaults>
</compile_context>

<pallas_src>
import functools

import jax
import jax.numpy as jnp
from jax.experimental import pallas as pl
from jax.experimental.pallas import tpu as pltpu


# ---------------------------------------------------------------------------
# Small helpers (MXU matmuls with f32 accumulation, softmax on the VPU/EUP).
# ---------------------------------------------------------------------------
def _dot(a, b):
    """a @ b  (contract a's last dim with b's first dim), f32 accumulation."""
    return jax.lax.dot_general(a, b, (((1,), (0,)), ((), ())),
                               preferred_element_type=jnp.float32)


def _dot_nt(a, b):
    """a @ b.T (contract last dims of both operands), f32 accumulation."""
    return jax.lax.dot_general(a, b, (((1,), (1,)), ((), ())),
                               preferred_element_type=jnp.float32)


def _softmax_lastdim(x):
    m = jnp.max(x, axis=-1, keepdims=True)
    e = jnp.exp(x - m)
    s = jnp.sum(e, axis=-1, keepdims=True)
    return e * pl.reciprocal(s, approx=True)


# ---------------------------------------------------------------------------
# Kernel 1 (fused, per group of G batch elements):
#   branch 2: sigmoid channel gating of the spectrum (block-diag 1x1 convs)
#   branch 1: block-diagonal complex attention over (group, head) blocks
# ---------------------------------------------------------------------------
def _fsa_spectrum_kernel(x_ref, tmask_ref, nbias_ref, w1_ref, w2_ref, b2_ref,
                         attn_ref, gate_ref):
    xr = x_ref[0, 0]                       # (GC, HW) f32, real part of fft2(x)
    xi = x_ref[0, 1]                       # (GC, HW) f32, imag part
    gc = xr.shape[0]

    # ---- branch 2 first (small live set): gating, block-diag 1x1 convs ------
    h1 = jnp.maximum(_dot(w1_ref[...], xr), 0.0)          # (G*8, HW) f32, relu
    g = jax.nn.sigmoid(_dot(w2_ref[...], h1) + b2_ref[...])   # (GC, HW) f32
    gate_ref[0, 0] = (g * xr).astype(gate_ref.dtype)
    gate_ref[0, 1] = (g * xi).astype(gate_ref.dtype)

    # ---- branch 1: frequency-domain attention -------------------------------
    # Row-wise complex L2 normalization (== F.normalize(v, dim=-1) per row).
    sumsq = jnp.sum(xr * xr + xi * xi, axis=-1, keepdims=True)
    inv = jax.lax.rsqrt(jnp.maximum(sumsq, 1e-24))
    qcat = jnp.concatenate([(xr * inv).astype(jnp.bfloat16),
                            (xi * inv).astype(jnp.bfloat16)], axis=0)  # (2GC,HW)

    # ONE score matmul; slice quadrants for the real / imag score parts.
    s = _dot_nt(qcat, qcat)                               # (2GC, 2GC) f32
    sr = s[:gc, :gc] - s[gc:, gc:]
    si = s[:gc, gc:] + s[gc:, :gc]

    # Block-diagonal mask (-1e30 off-block -> exp underflows to exactly 0) and
    # per-head temperature, precomputed as (GC, GC) matrices.
    tm = tmask_ref[...]
    nb = nbias_ref[...]
    ar = _softmax_lastdim(sr * tm + nb).astype(jnp.bfloat16)
    ai = _softmax_lastdim(si * tm + nb).astype(jnp.bfloat16)

    # Complex A @ v as two K=2GC matmuls:  [ar|ai] @ [[vr],[-vi]] and
    # [ar|ai] @ [[vi],[vr]].  A is exactly block-diagonal, so this equals the
    # per-(batch,head) batched matmul of the reference.
    vr = xr.astype(jnp.bfloat16)
    vi = xi.astype(jnp.bfloat16)
    a_cat = jnp.concatenate([ar, ai], axis=1)             # (GC, 2GC)
    attn_ref[0, 0] = _dot(a_cat, jnp.concatenate([vr, -vi], axis=0)
                          ).astype(attn_ref.dtype)
    attn_ref[0, 1] = _dot(a_cat, jnp.concatenate([vi, vr], axis=0)
                          ).astype(attn_ref.dtype)


# ---------------------------------------------------------------------------
# Kernel 2: final 1x1 projection (2C -> C, no bias), weight-stationary over
# the whole batch:  y = Wp @ A  with shapes (C,2C) @ (2C, B*HW), tiled along
# the lane (B*HW) dimension.
# ---------------------------------------------------------------------------
def _fsa_proj_kernel(a_ref, wp_ref, y_ref):
    y_ref[...] = _dot(wp_ref[...], a_ref[...]).astype(y_ref.dtype)


# ---------------------------------------------------------------------------
# Static tiling choices (trace-time, shapes are static under jit).
# ---------------------------------------------------------------------------
def _pick_group(batch, channels):
    """Largest divisor g of batch with g*channels <= 256, keeping >=2 steps."""
    cands = [g for g in range(1, batch + 1)
             if batch % g == 0 and g * channels <= 256]
    if not cands:
        return 1
    two_step = [g for g in cands if batch // g >= 2]
    return max(two_step) if two_step else max(cands)


def _pick_lane_tile(n):
    """Lane-tile for the projection: multiple of 128, >=2 tiles if possible."""
    for t in (2048, 1024, 512, 256, 128):
        if n % t == 0 and n // t >= 2:
            return t
    return n


# ---------------------------------------------------------------------------
# Full forward (FFT glue in XLA, hot paths in Pallas).
# ---------------------------------------------------------------------------
@functools.partial(jax.jit, static_argnames=("num_head",))
def fsa_forward(x, params, *, num_head):
    B, C, H, W = x.shape
    NH = num_head
    Ch = C // NH
    HW = H * W
    CH_PAD = 8                      # bottleneck width c=C//16 padded to 1 sublane group

    f32, bf16 = jnp.float32, jnp.bfloat16

    G = _pick_group(B, C)           # batch elements folded per grid step
    BG = B // G
    GC = G * C

    # ---- spectrum (stacked real/imag, G batch elements per row-group) -------
    xf = jnp.fft.fft2(x.astype(f32))                            # (B,C,H,W) c64
    x_stack = jnp.stack([jnp.real(xf).reshape(BG, GC, HW),
                         jnp.imag(xf).reshape(BG, GC, HW)], axis=1)  # (BG,2,GC,HW)

    # Block-diagonal (group,head) mask + per-head temperature as (GC,GC) mats.
    blk_id = jnp.arange(GC) // Ch                     # distinct per (g, head)
    head_id = blk_id % NH
    same = blk_id[:, None] == blk_id[None, :]
    temp = params["temp"].reshape(NH)
    tmask = jnp.where(same, temp[head_id][:, None], 0.0).astype(f32)
    nbias = jnp.where(same, 0.0, -1e30).astype(f32)

    # Block-diagonal, zero-padded (exact) f32 gating weights (channel-first).
    c_hid = params["w1"].shape[0]
    w1p = jnp.zeros((CH_PAD, C), f32).at[:c_hid, :].set(params["w1"])
    w2p = jnp.zeros((C, CH_PAD), f32).at[:, :c_hid].set(params["w2"])
    eye_g = jnp.eye(G, dtype=f32)
    w1_bd = jnp.kron(eye_g, w1p)                                # (G*8, GC)
    w2_bd = jnp.kron(eye_g, w2p)                                # (GC, G*8)
    b2_bd = jnp.tile(params["b2"], G).reshape(GC, 1).astype(f32)

    xblk_in = pl.BlockSpec((1, 2, GC, HW), lambda b: (b, 0, 0, 0))
    xblk_out = pl.BlockSpec((1, 2, GC, HW), lambda b: (b, 0, 0, 0))

    # Explicit VMEM limit (generous double-buffer estimate, capped for v7x).
    blk_bytes = (2 * GC * HW * 4          # f32 input plane pair
                 + 2 * (2 * GC * HW * 2)  # two bf16 output plane pairs
                 + 2 * GC * GC * 4        # tmask + nbias
                 + 2 * CH_PAD * G * GC * 4 + GC * 4)
    vmem_limit = int(min(64 * 2**20, max(16 * 2**20, 4 * blk_bytes)))

    attn_st, gate_st = pl.pallas_call(
        _fsa_spectrum_kernel,
        grid=(BG,),
        in_specs=[xblk_in,
                  pl.BlockSpec((GC, GC), lambda b: (0, 0)),
                  pl.BlockSpec((GC, GC), lambda b: (0, 0)),
                  pl.BlockSpec((CH_PAD * G, GC), lambda b: (0, 0)),
                  pl.BlockSpec((GC, CH_PAD * G), lambda b: (0, 0)),
                  pl.BlockSpec((GC, 1), lambda b: (0, 0))],
        out_specs=(xblk_out, xblk_out),
        out_shape=(jax.ShapeDtypeStruct((BG, 2, GC, HW), bf16),
                   jax.ShapeDtypeStruct((BG, 2, GC, HW), bf16)),
        compiler_params=pltpu.CompilerParams(
            dimension_semantics=("parallel",),
            vmem_limit_bytes=vmem_limit),
    )(x_stack, tmask, nbias, w1_bd, w2_bd, b2_bd)

    # branch 1: ifft2 over the reshaped (Ch, HW) dims (matches torch literally).
    o_r = attn_st[:, 0].astype(f32).reshape(B, NH, Ch, HW)
    o_i = attn_st[:, 1].astype(f32).reshape(B, NH, Ch, HW)
    branch1 = jnp.abs(jnp.fft.ifft2(jax.lax.complex(o_r, o_i))).reshape(B, C, HW)

    # branch 2: ifft2 over spatial (H, W).
    g_r = gate_st[:, 0].astype(f32).reshape(B, C, H, W)
    g_i = gate_st[:, 1].astype(f32).reshape(B, C, H, W)
    branch2 = jnp.abs(jnp.fft.ifft2(jax.lax.complex(g_r, g_i))).reshape(B, C, HW)

    # ---- projection: one weight-stationary (C,2C)x(2C,B*HW) matmul ----------
    a_cat = jnp.concatenate([branch1, branch2], axis=1)             # (B,2C,HW)
    a_wide = jnp.moveaxis(a_cat, 0, 1).reshape(2 * C, B * HW).astype(bf16)
    wp_b = params["wp"].astype(bf16)                                # (C, 2C)

    Ntot = B * HW
    TN = _pick_lane_tile(Ntot)
    y_wide = pl.pallas_call(
        _fsa_proj_kernel,
        grid=(Ntot // TN,),
        in_specs=[pl.BlockSpec((2 * C, TN), lambda n: (0, n)),
                  pl.BlockSpec((C, 2 * C), lambda n: (0, 0))],
        out_specs=pl.BlockSpec((C, TN), lambda n: (0, n)),
        out_shape=jax.ShapeDtypeStruct((C, Ntot), f32),
        compiler_params=pltpu.CompilerParams(
            dimension_semantics=("parallel",)),
    )(a_wide, wp_b)

    y = jnp.moveaxis(y_wide.reshape(C, B, HW), 0, 1)                # (B, C, HW)
    return y.reshape(B, C, H, W)


# ---------------------------------------------------------------------------
# Pure-JAX f32 reference (mirrors the PyTorch forward) for a sanity check.
# ---------------------------------------------------------------------------
def fsa_reference(x, params, *, num_head):
    B, C, H, W = x.shape
    NH = num_head
    xf = jnp.fft.fft2(x.astype(jnp.float32))
    v = xf.reshape(B, NH, C // NH, H * W)
    nrm = jnp.sqrt(jnp.sum(jnp.abs(v) ** 2, axis=-1, keepdims=True))
    qk = v / jnp.maximum(nrm, 1e-12)
    attn = jnp.einsum("bhcx,bhdx->bhcd", qk, qk) * params["temp"][None, :, None, None]
    attn = (jax.nn.softmax(attn.real, axis=-1)
            + 1j * jax.nn.softmax(attn.imag, axis=-1))
    o = jnp.einsum("bhcd,bhdx->bhcx", attn, v)
    branch1 = jnp.abs(jnp.fft.ifft2(o)).reshape(B, C, H, W)

    xr = xf.real
    h1 = jnp.maximum(jnp.einsum("oc,bchw->bohw", params["w1"], xr), 0.0)
    g = jax.nn.sigmoid(jnp.einsum("oc,bchw->bohw", params["w2"], h1)
                       + params["b2"][None, :, None, None])
    branch2 = jnp.abs(jnp.fft.ifft2(g * xf))

    cat = jnp.concatenate([branch1, branch2], axis=1)
    return jnp.einsum("ok,bkhw->bohw", params["wp"], cat)


# ---------------------------------------------------------------------------
if __name__ == "__main__":
    B, C, H, W = 2, 32, 16, 16
    NH = 8
    c_hid = C // 16                      # 2

    key = jax.random.PRNGKey(0)
    k1, k2, k3, k4, kx = jax.random.split(key, 5)
    params = {
        "temp": jnp.ones((NH,), jnp.float32),                       # (NH,1,1) param
        "w1": jax.random.normal(k1, (c_hid, C), jnp.float32) * 0.1,  # conv1 (c, C, 1, 1)
        "w2": jax.random.normal(k2, (C, c_hid), jnp.float32) * 0.1,  # conv2 (C, c, 1, 1)
        "b2": jax.random.normal(k3, (C,), jnp.float32) * 0.1,        # conv2 bias
        "wp": jax.random.normal(k4, (C, 2 * C), jnp.float32) * 0.1,  # proj (C, 2C, 1, 1)
    }
    x = jax.random.normal(kx, (B, C, H, W), jnp.float32)

    y = jax.block_until_ready(fsa_forward(x, params, num_head=NH))
    y_ref = jax.block_until_ready(fsa_reference(x, params, num_head=NH))

    assert y.shape == (B, C, H, W)
    max_err = float(jnp.max(jnp.abs(y - y_ref)))
    assert jnp.allclose(y, y_ref, rtol=2e-2, atol=2e-2), max_err
    print("KERNEL_OK")
</pallas_src>

<mosaic_0001>
module attributes {stable_mosaic.version = 11 : i64} {
  func.func @_fsa_spectrum_kernel(%arg0: i32, %arg1: memref<1x2x32x256xf32, #tpu.memory_space<vmem>>, %arg2: memref<32x32xf32, #tpu.memory_space<vmem>>, %arg3: memref<32x32xf32, #tpu.memory_space<vmem>>, %arg4: memref<8x32xf32, #tpu.memory_space<vmem>>, %arg5: memref<32x8xf32, #tpu.memory_space<vmem>>, %arg6: memref<32x1xf32, #tpu.memory_space<vmem>>, %arg7: memref<1x2x32x256xbf16, #tpu.memory_space<vmem>>, %arg8: memref<1x2x32x256xbf16, #tpu.memory_space<vmem>>) attributes {dimension_semantics = [#tpu.dimension_semantics<parallel>], iteration_bounds = array<i64: 2>, scalar_prefetch = 0 : i64, scratch_operands = 0 : i64, tpu.core_type = #tpu.core_type<tc>, window_params = [{transform_indices = @transform_0, window_bounds = array<i64: 1, 2, 32, 256>}, {pipeline_mode = #tpu.pipeline_mode<synchronous>, transform_indices = @transform_1, window_bounds = array<i64: 32, 32>}, {pipeline_mode = #tpu.pipeline_mode<synchronous>, transform_indices = @transform_2, window_bounds = array<i64: 32, 32>}, {pipeline_mode = #tpu.pipeline_mode<synchronous>, transform_indices = @transform_3, window_bounds = array<i64: 8, 32>}, {pipeline_mode = #tpu.pipeline_mode<synchronous>, transform_indices = @transform_4, window_bounds = array<i64: 32, 8>}, {pipeline_mode = #tpu.pipeline_mode<synchronous>, transform_indices = @transform_5, window_bounds = array<i64: 32, 1>}, {transform_indices = @transform_6, window_bounds = array<i64: 1, 2, 32, 256>}, {transform_indices = @transform_7, window_bounds = array<i64: 1, 2, 32, 256>}]} {
    %c0 = arith.constant 0 : index
    %c0_0 = arith.constant 0 : index
    %c0_1 = arith.constant 0 : index
    %c0_2 = arith.constant 0 : index
    %0 = vector.load %arg1[%c0, %c0_0, %c0_1, %c0_2] : memref<1x2x32x256xf32, #tpu.memory_space<vmem>>, vector<1x1x32x256xf32>
    %1 = vector.shape_cast %0 : vector<1x1x32x256xf32> to vector<32x256xf32>
    %c0_3 = arith.constant 0 : index
    %c1 = arith.constant 1 : index
    %c0_4 = arith.constant 0 : index
    %c0_5 = arith.constant 0 : index
    %2 = vector.load %arg1[%c0_3, %c1, %c0_4, %c0_5] : memref<1x2x32x256xf32, #tpu.memory_space<vmem>>, vector<1x1x32x256xf32>
    %3 = vector.shape_cast %2 : vector<1x1x32x256xf32> to vector<32x256xf32>
    %c0_6 = arith.constant 0 : index
    %c0_7 = arith.constant 0 : index
    %4 = vector.load %arg4[%c0_6, %c0_7] : memref<8x32xf32, #tpu.memory_space<vmem>>, vector<8x32xf32>
    %cst = arith.constant dense<0.000000e+00> : vector<8x256xf32>
    %5 = tpu.matmul %4, %1, %cst {dimension_numbers = #tpu.dot_dimension_numbers<[1], [0], [0], [1], [0, 0, 1, 1], [], []>} : vector<8x32xf32>, vector<32x256xf32>, vector<8x256xf32> -> vector<8x256xf32>
    %cst_8 = arith.constant 0.000000e+00 : f32
    %6 = vector.broadcast %cst_8 : f32 to vector<8x256xf32>
    %7 = arith.maximumf %5, %6 : vector<8x256xf32>
    %c0_9 = arith.constant 0 : index
    %c0_10 = arith.constant 0 : index
    %8 = vector.load %arg5[%c0_9, %c0_10] : memref<32x8xf32, #tpu.memory_space<vmem>>, vector<32x8xf32>
    %cst_11 = arith.constant dense<0.000000e+00> : vector<32x256xf32>
    %9 = tpu.matmul %8, %7, %cst_11 {dimension_numbers = #tpu.dot_dimension_numbers<[1], [0], [0], [1], [0, 0, 1, 1], [], []>} : vector<32x8xf32>, vector<8x256xf32>, vector<32x256xf32> -> vector<32x256xf32>
    %c0_12 = arith.constant 0 : index
    %c0_13 = arith.constant 0 : index
    %10 = vector.load %arg6[%c0_12, %c0_13] : memref<32x1xf32, #tpu.memory_space<vmem>>, vector<32x1xf32>
    %11 = vector.broadcast %10 : vector<32x1xf32> to vector<32x256xf32>
    %12 = arith.addf %9, %11 : vector<32x256xf32>
    %13 = arith.negf %12 : vector<32x256xf32>
    %14 = math.exp %13 : vector<32x256xf32>
    %cst_14 = arith.constant 1.000000e+00 : f32
    %15 = vector.broadcast %cst_14 : f32 to vector<32x256xf32>
    %16 = arith.addf %15, %14 : vector<32x256xf32>
    %17 = arith.divf %15, %16 : vector<32x256xf32>
    %18 = arith.mulf %17, %1 : vector<32x256xf32>
    %19 = arith.truncf %18 : vector<32x256xf32> to vector<32x256xbf16>
    %c0_15 = arith.constant 0 : index
    %c0_16 = arith.constant 0 : index
    %c0_17 = arith.constant 0 : index
    %c0_18 = arith.constant 0 : index
    %20 = vector.load %arg8[%c0_15, %c0_16, %c0_17, %c0_18] : memref<1x2x32x256xbf16, #tpu.memory_space<vmem>>, vector<1x1x32x256xbf16>
    %21 = vector.shape_cast %20 : vector<1x1x32x256xbf16> to vector<32x256xbf16>
    %22 = vector.shape_cast %19 : vector<32x256xbf16> to vector<1x1x32x256xbf16>
    tpu.vector_store %arg8[%c0_15, %c0_16, %c0_17, %c0_18], %22 {strides = array<i32>} : memref<1x2x32x256xbf16, #tpu.memory_space<vmem>>, vector<1x1x32x256xbf16>,
    %23 = arith.mulf %17, %3 : vector<32x256xf32>
    %24 = arith.truncf %23 : vector<32x256xf32> to vector<32x256xbf16>
    %c0_19 = arith.constant 0 : index
    %c1_20 = arith.constant 1 : index
    %c0_21 = arith.constant 0 : index
    %c0_22 = arith.constant 0 : index
    %25 = vector.load %arg8[%c0_19, %c1_20, %c0_21, %c0_22] : memref<1x2x32x256xbf16, #tpu.memory_space<vmem>>, vector<1x1x32x256xbf16>
    %26 = vector.shape_cast %25 : vector<1x1x32x256xbf16> to vector<32x256xbf16>
    %27 = vector.shape_cast %24 : vector<32x256xbf16> to vector<1x1x32x256xbf16>
    tpu.vector_store %arg8[%c0_19, %c1_20, %c0_21, %c0_22], %27 {strides = array<i32>} : memref<1x2x32x256xbf16, #tpu.memory_space<vmem>>, vector<1x1x32x256xbf16>,
    %28 = arith.mulf %1, %1 : vector<32x256xf32>
    %29 = arith.mulf %3, %3 : vector<32x256xf32>
    %30 = arith.addf %28, %29 : vector<32x256xf32>
    %cst_23 = arith.constant dense<0.000000e+00> : vector<32xf32>
    %31 = vector.multi_reduction <add>, %30, %cst_23 [1] : vector<32x256xf32> to vector<32xf32>
    %32 = vector.shape_cast %31 : vector<32xf32> to vector<32x1xf32>
    %cst_24 = arith.constant 1.000000e-24 : f32
    %33 = vector.broadcast %cst_24 : f32 to vector<32x1xf32>
    %34 = arith.maximumf %32, %33 : vector<32x1xf32>
    %35 = math.rsqrt %34 : vector<32x1xf32>
    %36 = vector.broadcast %35 : vector<32x1xf32> to vector<32x256xf32>
    %37 = arith.mulf %1, %36 : vector<32x256xf32>
    %38 = arith.truncf %37 : vector<32x256xf32> to vector<32x256xbf16>
    %39 = vector.broadcast %35 : vector<32x1xf32> to vector<32x256xf32>
    %40 = arith.mulf %3, %39 : vector<32x256xf32>
    %41 = arith.truncf %40 : vector<32x256xf32> to vector<32x256xbf16>
    %42 = tpu.concatenate %38, %41 in 0 : vector<32x256xbf16>, vector<32x256xbf16> -> vector<64x256xbf16>
    %cst_25 = arith.constant dense<0.000000e+00> : vector<64x64xf32>
    %43 = tpu.matmul %42, %42, %cst_25 {dimension_numbers = #tpu.dot_dimension_numbers<[1], [1], [0], [0], [0, 0, 1, 0], [], []>} : vector<64x256xbf16>, vector<64x256xbf16>, vector<64x64xf32> -> vector<64x64xf32>
    %44 = vector.extract_strided_slice %43 {offsets = [0, 0], sizes = [32, 32], strides = [1, 1]} : vector<64x64xf32> to vector<32x32xf32>
    %45 = vector.extract_strided_slice %43 {offsets = [32, 32], sizes = [32, 32], strides = [1, 1]} : vector<64x64xf32> to vector<32x32xf32>
    %46 = arith.subf %44, %45 : vector<32x32xf32>
    %47 = vector.extract_strided_slice %43 {offsets = [0, 32], sizes = [32, 32], strides = [1, 1]} : vector<64x64xf32> to vector<32x32xf32>
    %48 = vector.extract_strided_slice %43 {offsets = [32, 0], sizes = [32, 32], strides = [1, 1]} : vector<64x64xf32> to vector<32x32xf32>
    %49 = arith.addf %47, %48 : vector<32x32xf32>
    %c0_26 = arith.constant 0 : index
    %c0_27 = arith.constant 0 : index
    %50 = vector.load %arg2[%c0_26, %c0_27] : memref<32x32xf32, #tpu.memory_space<vmem>>, vector<32x32xf32>
    %c0_28 = arith.constant 0 : index
    %c0_29 = arith.constant 0 : index
    %51 = vector.load %arg3[%c0_28, %c0_29] : memref<32x32xf32, #tpu.memory_space<vmem>>, vector<32x32xf32>
    %52 = arith.mulf %46, %50 : vector<32x32xf32>
    %53 = arith.addf %52, %51 : vector<32x32xf32>
    %cst_30 = arith.constant dense<0xFF800000> : vector<32xf32>
    %54 = vector.multi_reduction <maximumf>, %53, %cst_30 [1] : vector<32x32xf32> to vector<32xf32>
    %55 = vector.shape_cast %54 : vector<32xf32> to vector<32x1xf32>
    %56 = vector.broadcast %55 : vector<32x1xf32> to vector<32x32xf32>
    %57 = arith.subf %53, %56 : vector<32x32xf32>
    %58 = math.exp %57 : vector<32x32xf32>
    %cst_31 = arith.constant dense<0.000000e+00> : vector<32xf32>
    %59 = vector.multi_reduction <add>, %58, %cst_31 [1] : vector<32x32xf32> to vector<32xf32>
    %60 = vector.shape_cast %59 : vector<32xf32> to vector<32x1xf32>
    %61 = tpu.reciprocal %60 {approx = true} : vector<32x1xf32> -> vector<32x1xf32>
    %62 = vector.broadcast %61 : vector<32x1xf32> to vector<32x32xf32>
    %63 = arith.mulf %58, %62 : vector<32x32xf32>
    %64 = arith.truncf %63 : vector<32x32xf32> to vector<32x32xbf16>
    %65 = arith.mulf %49, %50 : vector<32x32xf32>
    %66 = arith.addf %65, %51 : vector<32x32xf32>
    %cst_32 = arith.constant dense<0xFF800000> : vector<32xf32>
    %67 = vector.multi_reduction <maximumf>, %66, %cst_32 [1] : vector<32x32xf32> to vector<32xf32>
    %68 = vector.shape_cast %67 : vector<32xf32> to vector<32x1xf32>
    %69 = vector.broadcast %68 : vector<32x1xf32> to vector<32x32xf32>
    %70 = arith.subf %66, %69 : vector<32x32xf32>
    %71 = math.exp %70 : vector<32x32xf32>
    %cst_33 = arith.constant dense<0.000000e+00> : vector<32xf32>
    %72 = vector.multi_reduction <add>, %71, %cst_33 [1] : vector<32x32xf32> to vector<32xf32>
    %73 = vector.shape_cast %72 : vector<32xf32> to vector<32x1xf32>
    %74 = tpu.reciprocal %73 {approx = true} : vector<32x1xf32> -> vector<32x1xf32>
    %75 = vector.broadcast %74 : vector<32x1xf32> to vector<32x32xf32>
    %76 = arith.mulf %71, %75 : vector<32x32xf32>
    %77 = arith.truncf %76 : vector<32x32xf32> to vector<32x32xbf16>
    %78 = arith.truncf %1 : vector<32x256xf32> to vector<32x256xbf16>
    %79 = arith.truncf %3 : vector<32x256xf32> to vector<32x256xbf16>
    %80 = tpu.concatenate %64, %77 in 1 : vector<32x32xbf16>, vector<32x32xbf16> -> vector<32x64xbf16>
    %cst_34 = arith.constant 0.000000e+00 : bf16
    %81 = vector.broadcast %cst_34 : bf16 to vector<32x256xbf16>
    %82 = arith.subf %81, %79 : vector<32x256xbf16>
    %83 = tpu.concatenate %78, %82 in 0 : vector<32x256xbf16>, vector<32x256xbf16> -> vector<64x256xbf16>
    %cst_35 = arith.constant dense<0.000000e+00> : vector<32x256xf32>
    %84 = tpu.matmul %80, %83, %cst_35 {dimension_numbers = #tpu.dot_dimension_numbers<[1], [0], [0], [1], [0, 0, 1, 1], [], []>} : vector<32x64xbf16>, vector<64x256xbf16>, vector<32x256xf32> -> vector<32x256xf32>
    %85 = arith.truncf %84 : vector<32x256xf32> to vector<32x256xbf16>
    %c0_36 = arith.constant 0 : index
    %c0_37 = arith.constant 0 : index
    %c0_38 = arith.constant 0 : index
    %c0_39 = arith.constant 0 : index
    %86 = vector.load %arg7[%c0_36, %c0_37, %c0_38, %c0_39] : memref<1x2x32x256xbf16, #tpu.memory_space<vmem>>, vector<1x1x32x256xbf16>
    %87 = vector.shape_cast %86 : vector<1x1x32x256xbf16> to vector<32x256xbf16>
    %88 = vector.shape_cast %85 : vector<32x256xbf16> to vector<1x1x32x256xbf16>
    tpu.vector_store %arg7[%c0_36, %c0_37, %c0_38, %c0_39], %88 {strides = array<i32>} : memref<1x2x32x256xbf16, #tpu.memory_space<vmem>>, vector<1x1x32x256xbf16>,
    %89 = tpu.concatenate %79, %78 in 0 : vector<32x256xbf16>, vector<32x256xbf16> -> vector<64x256xbf16>
    %cst_40 = arith.constant dense<0.000000e+00> : vector<32x256xf32>
    %90 = tpu.matmul %80, %89, %cst_40 {dimension_numbers = #tpu.dot_dimension_numbers<[1], [0], [0], [1], [0, 0, 1, 1], [], []>} : vector<32x64xbf16>, vector<64x256xbf16>, vector<32x256xf32> -> vector<32x256xf32>
    %91 = arith.truncf %90 : vector<32x256xf32> to vector<32x256xbf16>
    %c0_41 = arith.constant 0 : index
    %c1_42 = arith.constant 1 : index
    %c0_43 = arith.constant 0 : index
    %c0_44 = arith.constant 0 : index
    %92 = vector.load %arg7[%c0_41, %c1_42, %c0_43, %c0_44] : memref<1x2x32x256xbf16, #tpu.memory_space<vmem>>, vector<1x1x32x256xbf16>
    %93 = vector.shape_cast %92 : vector<1x1x32x256xbf16> to vector<32x256xbf16>
    %94 = vector.shape_cast %91 : vector<32x256xbf16> to vector<1x1x32x256xbf16>
    tpu.vector_store %arg7[%c0_41, %c1_42, %c0_43, %c0_44], %94 {strides = array<i32>} : memref<1x2x32x256xbf16, #tpu.memory_space<vmem>>, vector<1x1x32x256xbf16>,
    return
  }
  func.func @transform_0(%arg0: i32) -> (i32, i32, i32, i32) {
    %c0_i32 = arith.constant 0 : i32
    %c0_i32_0 = arith.constant 0 : i32
    %c0_i32_1 = arith.constant 0 : i32
    %c0_i32_2 = arith.constant 0 : i32
    return %arg0, %c0_i32, %c0_i32_0, %c0_i32_1 : i32, i32, i32, i32
  }
  func.func @transform_1(%arg0: i32) -> (i32, i32) {
    %c0_i32 = arith.constant 0 : i32
    %c0_i32_0 = arith.constant 0 : i32
    %c0_i32_1 = arith.constant 0 : i32
    return %c0_i32, %c0_i32_0 : i32, i32
  }
  func.func @transform_2(%arg0: i32) -> (i32, i32) {
    %c0_i32 = arith.constant 0 : i32
    %c0_i32_0 = arith.constant 0 : i32
    %c0_i32_1 = arith.constant 0 : i32
    return %c0_i32, %c0_i32_0 : i32, i32
  }
  func.func @transform_3(%arg0: i32) -> (i32, i32) {
    %c0_i32 = arith.constant 0 : i32
    %c0_i32_0 = arith.constant 0 : i32
    %c0_i32_1 = arith.constant 0 : i32
    return %c0_i32, %c0_i32_0 : i32, i32
  }
  func.func @transform_4(%arg0: i32) -> (i32, i32) {
    %c0_i32 = arith.constant 0 : i32
    %c0_i32_0 = arith.constant 0 : i32
    %c0_i32_1 = arith.constant 0 : i32
    return %c0_i32, %c0_i32_0 : i32, i32
  }
  func.func @transform_5(%arg0: i32) -> (i32, i32) {
    %c0_i32 = arith.constant 0 : i32
    %c0_i32_0 = arith.constant 0 : i32
    %c0_i32_1 = arith.constant 0 : i32
    return %c0_i32, %c0_i32_0 : i32, i32
  }
  func.func @transform_6(%arg0: i32) -> (i32, i32, i32, i32) {
    %c0_i32 = arith.constant 0 : i32
    %c0_i32_0 = arith.constant 0 : i32
    %c0_i32_1 = arith.constant 0 : i32
    %c0_i32_2 = arith.constant 0 : i32
    return %arg0, %c0_i32, %c0_i32_0, %c0_i32_1 : i32, i32, i32, i32
  }
  func.func @transform_7(%arg0: i32) -> (i32, i32, i32, i32) {
    %c0_i32 = arith.constant 0 : i32
    %c0_i32_0 = arith.constant 0 : i32
    %c0_i32_1 = arith.constant 0 : i32
    %c0_i32_2 = arith.constant 0 : i32
    return %arg0, %c0_i32, %c0_i32_0, %c0_i32_1 : i32, i32, i32, i32
  }
}

module attributes {stable_mosaic.version = 11 : i64} {
  func.func @_fsa_proj_kernel(%arg0: i32, %arg1: memref<64x256xbf16, #tpu.memory_space<vmem>>, %arg2: memref<32x64xbf16, #tpu.memory_space<vmem>>, %arg3: memref<32x256xf32, #tpu.memory_space<vmem>>) attributes {dimension_semantics = [#tpu.dimension_semantics<parallel>], iteration_bounds = array<i64: 2>, scalar_prefetch = 0 : i64, scratch_operands = 0 : i64, tpu.core_type = #tpu.core_type<tc>, window_params = [{transform_indices = @transform_0, window_bounds = array<i64: 64, 256>}, {pipeline_mode = #tpu.pipeline_mode<synchronous>, transform_indices = @transform_1, window_bounds = array<i64: 32, 64>}, {transform_indices = @transform_2, window_bounds = array<i64: 32, 256>}]} {
    %c0 = arith.constant 0 : index
    %c0_0 = arith.constant 0 : index
    %0 = vector.load %arg2[%c0, %c0_0] : memref<32x64xbf16, #tpu.memory_space<vmem>>, vector<32x64xbf16>
    %c0_1 = arith.constant 0 : index
    %c0_2 = arith.constant 0 : index
    %1 = vector.load %arg1[%c0_1, %c0_2] : memref<64x256xbf16, #tpu.memory_space<vmem>>, vector<64x256xbf16>
    %cst = arith.constant dense<0.000000e+00> : vector<32x256xf32>
    %2 = tpu.matmul %0, %1, %cst {dimension_numbers = #tpu.dot_dimension_numbers<[1], [0], [0], [1], [0, 0, 1, 1], [], []>} : vector<32x64xbf16>, vector<64x256xbf16>, vector<32x256xf32> -> vector<32x256xf32>
    %c0_3 = arith.constant 0 : index
    %c0_4 = arith.constant 0 : index
    %3 = vector.load %arg3[%c0_3, %c0_4] : memref<32x256xf32, #tpu.memory_space<vmem>>, vector<32x256xf32>
    tpu.vector_store %arg3[%c0_3, %c0_4], %2 {strides = array<i32>} : memref<32x256xf32, #tpu.memory_space<vmem>>, vector<32x256xf32>,
    return
  }
  func.func @transform_0(%arg0: i32) -> (i32, i32) {
    %c0_i32 = arith.constant 0 : i32
    %c0_i32_0 = arith.constant 0 : i32
    return %c0_i32, %arg0 : i32, i32
  }
  func.func @transform_1(%arg0: i32) -> (i32, i32) {
    %c0_i32 = arith.constant 0 : i32
    %c0_i32_0 = arith.constant 0 : i32
    %c0_i32_1 = arith.constant 0 : i32
    return %c0_i32, %c0_i32_0 : i32, i32
  }
  func.func @transform_2(%arg0: i32) -> (i32, i32) {
    %c0_i32 = arith.constant 0 : i32
    %c0_i32_0 = arith.constant 0 : i32
    return %c0_i32, %arg0 : i32, i32
  }
}

</mosaic_0001>

<llo_original>
// kernel: fsa_forward.2
$region0: #{fsa_forward.2}
  #allocation0 [shape = 'u32[]', space=smem, size = 0x4, offset = 0x4, fixed_abs, tag = 'smem constant byte address 0x4 - core index']
  #allocation1 [shape = 'u32[144,128]{1,0:T(1,128)}', space=vmem, size = 0x12000, scoped, tag = 'internal scratch']
  %s0 = inlined_call_operand.vmem [shape: f32[2,2,32,256], index: 0, kind: input, shape index: {}]
  %s1 = inlined_call_operand.vmem [shape: f32[32,32], index: 1, kind: input, shape index: {}]
  %s2 = inlined_call_operand.vmem [shape: f32[32,32], index: 2, kind: input, shape index: {}]
  %s3 = inlined_call_operand.vmem [shape: f32[8,32], index: 3, kind: input, shape index: {}]
  %s4 = inlined_call_operand.vmem [shape: f32[32,8], index: 4, kind: input, shape index: {}]
  %s5 = inlined_call_operand.vmem [shape: f32[32,1], index: 5, kind: input, shape index: {}]
  %s6 = inlined_call_operand.vmem [shape: bf16[2,2,32,256], index: 6, kind: output, shape index: {0}]
  %s7 = inlined_call_operand.vmem [shape: bf16[2,2,32,256], index: 7, kind: output, shape index: {1}]
  %8 = xla_tuple %s6, %s7
  %s9 = sld [smem:[#allocation0]]
  $region65: #{fsa_forward.2} parent=0
    _
  %s11 = ssub.s32 1, %s9
  %s12 = scalar_select 0, %s11, %s9
  loop: start=0, step=1, limit=4
  $region2: #{fsa_forward.2} parent=0 // loop_pre_header
    _
  $region3: #{fsa_forward.2} parent=0 // loop_header
    %s14 = sphi 0, %s18
    %p15 = scmp.ge.s32.totalorder %s14, 4
    %s24 = sphi 0, %s26
    %s27 = sphi 0, %s24
    %s28 = sphi 0, %s27
    %s44 = sphi 0, %s28
    %s48 = sphi 0, %s48
    %s50 = sphi 0, %s48
    %s51 = sphi 0, %s50
    %s65 = sphi 0, %s51
    %s69 = sphi 0, %s69
    %s71 = sphi 0, %s69
    %s72 = sphi 0, %s71
    %s86 = sphi 0, %s72
    %s90 = sphi 0, %s90
    %s92 = sphi 0, %s90
    %s93 = sphi 0, %s92
    %s107 = sphi 0, %s93
    %s111 = sphi 0, %s111
    %s113 = sphi 0, %s111
    %s114 = sphi 0, %s113
    %s128 = sphi 0, %s114
    %s132 = sphi 0, %s132
    %s134 = sphi 0, %s132
    %s135 = sphi 0, %s134
    %s149 = sphi 0, %s135
    %s155 = sphi 0, %s157
    %s158 = sphi 0, %s155
    %s159 = sphi 0, %s158
    %s175 = sphi 0, %s159
    %s181 = sphi 0, %s183
    %s184 = sphi 0, %s181
    %s185 = sphi 0, %s184
    %s201 = sphi 0, %s185
  $region4: #{fsa_forward.2} parent=0 // loop_header_branch
    %17 = sbr.rel (%p15) target = $region8
  $region5: #{fsa_forward.2} parent=0 // loop_body
    %s19 = ssub.s32 %s14, 1
    %s20 = ssub.s32 %s14, 2
    %s21 = sadd.s32 %s14, 1
    %s22 = ssub.s32 %s14, %s21
    %p23 = scmp.eq.s32.totalorder %s22, 0
    %s25 = sadd.s32 %s24, 1
    %s26 = scalar_select %p23, %s24, %s25
    %p29 = pneg %p23
    %p30 = scmp.eq.s32.totalorder %s14, 1
    %p31 = por %p29, %p30
    %p32 = scmp.ne.s32.totalorder %s24, %s27
    %p33 = scmp.eq.s32.totalorder %s14, 0
    %p34 = por %p32, %p33
    %p35 = scmp.ne.s32.totalorder %s24, %s27
    %p36 = scmp.eq.s32.totalorder %s19, 1
    %p37 = por %p35, %p36
    %p38 = scmp.ne.s32.totalorder %s27, %s28
    %p39 = scmp.eq.s32.totalorder %s19, 0
    %p40 = por %p38, %p39
    %p41 = scmp.ne.s32.totalorder %s27, %s28
    %p42 = scmp.eq.s32.totalorder %s20, 1
    %p43 = por %p41, %p42
    %p45 = scmp.ne.s32.totalorder %s28, %s44
    %p46 = scmp.eq.s32.totalorder %s20, 0
    %p47 = por %p45, %p46
    %s49 = sadd.s32 %s48, 1
    %p52 = scmp.eq.s32.totalorder %s14, 1
    %p53 = scmp.ne.s32.totalorder %s48, %s50
    %p54 = scmp.eq.s32.totalorder %s14, 0
    %p55 = por %p53, %p54
    %p56 = scmp.ne.s32.totalorder %s48, %s50
    %p57 = scmp.eq.s32.totalorder %s19, 1
    %p58 = por %p56, %p57
    %p59 = scmp.ne.s32.totalorder %s50, %s51
    %p60 = scmp.eq.s32.totalorder %s19, 0
    %p61 = por %p59, %p60
    %p62 = scmp.ne.s32.totalorder %s50, %s51
    %p63 = scmp.eq.s32.totalorder %s20, 1
    %p64 = por %p62, %p63
    %p66 = scmp.ne.s32.totalorder %s51, %s65
    %p67 = scmp.eq.s32.totalorder %s20, 0
    %p68 = por %p66, %p67
    %s70 = sadd.s32 %s69, 1
    %p73 = scmp.eq.s32.totalorder %s14, 1
    %p74 = scmp.ne.s32.totalorder %s69, %s71
    %p75 = scmp.eq.s32.totalorder %s14, 0
    %p76 = por %p74, %p75
    %p77 = scmp.ne.s32.totalorder %s69, %s71
    %p78 = scmp.eq.s32.totalorder %s19, 1
    %p79 = por %p77, %p78
    %p80 = scmp.ne.s32.totalorder %s71, %s72
    %p81 = scmp.eq.s32.totalorder %s19, 0
    %p82 = por %p80, %p81
    %p83 = scmp.ne.s32.totalorder %s71, %s72
    %p84 = scmp.eq.s32.totalorder %s20, 1
    %p85 = por %p83, %p84
    %p87 = scmp.ne.s32.totalorder %s72, %s86
    %p88 = scmp.eq.s32.totalorder %s20, 0
    %p89 = por %p87, %p88
    %s91 = sadd.s32 %s90, 1
    %p94 = scmp.eq.s32.totalorder %s14, 1
    %p95 = scmp.ne.s32.totalorder %s90, %s92
    %p96 = scmp.eq.s32.totalorder %s14, 0
    %p97 = por %p95, %p96
    %p98 = scmp.ne.s32.totalorder %s90, %s92
    %p99 = scmp.eq.s32.totalorder %s19, 1
    %p100 = por %p98, %p99
    %p101 = scmp.ne.s32.totalorder %s92, %s93
    %p102 = scmp.eq.s32.totalorder %s19, 0
    %p103 = por %p101, %p102
    %p104 = scmp.ne.s32.totalorder %s92, %s93
    %p105 = scmp.eq.s32.totalorder %s20, 1
    %p106 = por %p104, %p105
    %p108 = scmp.ne.s32.totalorder %s93, %s107
    %p109 = scmp.eq.s32.totalorder %s20, 0
    %p110 = por %p108, %p109
    %s112 = sadd.s32 %s111, 1
    %p115 = scmp.eq.s32.totalorder %s14, 1
    %p116 = scmp.ne.s32.totalorder %s111, %s113
    %p117 = scmp.eq.s32.totalorder %s14, 0
    %p118 = por %p116, %p117
    %p119 = scmp.ne.s32.totalorder %s111, %s113
    %p120 = scmp.eq.s32.totalorder %s19, 1
    %p121 = por %p119, %p120
    %p122 = scmp.ne.s32.totalorder %s113, %s114
    %p123 = scmp.eq.s32.totalorder %s19, 0
    %p124 = por %p122, %p123
    %p125 = scmp.ne.s32.totalorder %s113, %s114
    %p126 = scmp.eq.s32.totalorder %s20, 1
    %p127 = por %p125, %p126
    %p129 = scmp.ne.s32.totalorder %s114, %s128
    %p130 = scmp.eq.s32.totalorder %s20, 0
    %p131 = por %p129, %p130
    %s133 = sadd.s32 %s132, 1
    %p136 = scmp.eq.s32.totalorder %s14, 1
    %p137 = scmp.ne.s32.totalorder %s132, %s134
    %p138 = scmp.eq.s32.totalorder %s14, 0
    %p139 = por %p137, %p138
    %p140 = scmp.ne.s32.totalorder %s132, %s134
    %p141 = scmp.eq.s32.totalorder %s19, 1
    %p142 = por %p140, %p141
    %p143 = scmp.ne.s32.totalorder %s134, %s135
    %p144 = scmp.eq.s32.totalorder %s19, 0
    %p145 = por %p143, %p144
    %p146 = scmp.ne.s32.totalorder %s134, %s135
    %p147 = scmp.eq.s32.totalorder %s20, 1
    %p148 = por %p146, %p147
    %p150 = scmp.ne.s32.totalorder %s135, %s149
    %p151 = scmp.eq.s32.totalorder %s20, 0
    %p152 = por %p150, %p151
    %s153 = ssub.s32 %s14, %s21
    %p154 = scmp.eq.s32.totalorder %s153, 0
    %s156 = sadd.s32 %s155, 1
    %s157 = scalar_select %p154, %s155, %s156
    %p160 = pneg %p154
    %p161 = scmp.eq.s32.totalorder %s14, 1
    %p162 = por %p160, %p161
    %p163 = scmp.ne.s32.totalorder %s155, %s158
    %p164 = scmp.eq.s32.totalorder %s14, 0
    %p165 = por %p163, %p164
    %p166 = scmp.ne.s32.totalorder %s155, %s158
    %p167 = scmp.eq.s32.totalorder %s19, 1
    %p168 = por %p166, %p167
    %p169 = scmp.ne.s32.totalorder %s158, %s159
    %p170 = scmp.eq.s32.totalorder %s19, 0
    %p171 = por %p169, %p170
    %p172 = scmp.ne.s32.totalorder %s158, %s159
    %p173 = scmp.eq.s32.totalorder %s20, 1
    %p174 = por %p172, %p173
    %p176 = scmp.ne.s32.totalorder %s159, %s175
    %p177 = scmp.eq.s32.totalorder %s20, 0
    %p178 = por %p176, %p177
    %s179 = ssub.s32 %s14, %s21
    %p180 = scmp.eq.s32.totalorder %s179, 0
    %s182 = sadd.s32 %s181, 1
    %s183 = scalar_select %p180, %s181, %s182
    %p186 = pneg %p180
    %p187 = scmp.eq.s32.totalorder %s14, 1
    %p188 = por %p186, %p187
    %p189 = scmp.ne.s32.totalorder %s181, %s184
    %p190 = scmp.eq.s32.totalorder %s14, 0
    %p191 = por %p189, %p190
    %p192 = scmp.ne.s32.totalorder %s181, %s184
    %p193 = scmp.eq.s32.totalorder %s19, 1
    %p194 = por %p192, %p193
    %p195 = scmp.ne.s32.totalorder %s184, %s185
    %p196 = scmp.eq.s32.totalorder %s19, 0
    %p197 = por %p195, %p196
    %p198 = scmp.ne.s32.totalorder %s184, %s185
    %p199 = scmp.eq.s32.totalorder %s20, 1
    %p200 = por %p198, %p199
    %p202 = scmp.ne.s32.totalorder %s185, %s201
    %p203 = scmp.eq.s32.totalorder %s20, 0
    %p204 = por %p202, %p203
    %p205 = scmp.le.s32.totalorder 1, %s14
    %p206 = scmp.lt.s32.totalorder %s14, 3
    %p207 = pnand %p205, %p206
    %p208 = pneg %p207
    // Predicated region
    $region9: #{fsa_forward.2} parent=5 // pred_check
      _
    $region10: #{fsa_forward.2} parent=5 // pred_check_branch
      %210 = sbr.rel (%p207) target = $region12
    $region11: #{fsa_forward.2} parent=5 // pred_region
      %s211 = ssub.s32 %s14, 1
      // Predicated region
      $region13: #{fsa_forward.2} parent=11 // pred_check
        %p212 = pneg %p61
      $region14: #{fsa_forward.2} parent=11 // pred_check_branch
        %214 = sbr.rel (%p212) target = $region16
      $region15: #{fsa_forward.2} parent=11 // pred_region
        _
      $region16: #{fsa_forward.2} parent=11 // pred_fallthru
        _
      // Predicated region
      $region17: #{fsa_forward.2} parent=11 // pred_check
        %p215 = pneg %p82
      $region18: #{fsa_forward.2} parent=11 // pred_check_branch
        %217 = sbr.rel (%p215) target = $region20
      $region19: #{fsa_forward.2} parent=11 // pred_region
        _
      $region20: #{fsa_forward.2} parent=11 // pred_fallthru
        _
      // Predicated region
      $region21: #{fsa_forward.2} parent=11 // pred_check
        %p218 = pneg %p103
      $region22: #{fsa_forward.2} parent=11 // pred_check_branch
        %220 = sbr.rel (%p218) target = $region24
      $region23: #{fsa_forward.2} parent=11 // pred_region
        _
      $region24: #{fsa_forward.2} parent=11 // pred_fallthru
        _
      // Predicated region
      $region25: #{fsa_forward.2} parent=11 // pred_check
        %p221 = pneg %p124
      $region26: #{fsa_forward.2} parent=11 // pred_check_branch
        %223 = sbr.rel (%p221) target = $region28
      $region27: #{fsa_forward.2} parent=11 // pred_region
        _
      $region28: #{fsa_forward.2} parent=11 // pred_fallthru
        _
      // Predicated region
      $region29: #{fsa_forward.2} parent=11 // pred_check
        %p224 = pneg %p145
      $region30: #{fsa_forward.2} parent=11 // pred_check_branch
        %226 = sbr.rel (%p224) target = $region32
      $region31: #{fsa_forward.2} parent=11 // pred_region
        _
      $region32: #{fsa_forward.2} parent=11 // pred_fallthru
        _
    $region12: #{fsa_forward.2} parent=5 // pred_fallthru
      _
    %p227 = scmp.lt.s32.totalorder %s14, 2
    // Predicated region
    $region33: #{fsa_forward.2} parent=5 // pred_check
      %p228 = pneg %p227
    $region34: #{fsa_forward.2} parent=5 // pred_check_branch
      %230 = sbr.rel (%p228) target = $region36
    $region35: #{fsa_forward.2} parent=5 // pred_region
      // Predicated region
      $region37: #{fsa_forward.2} parent=35 // pred_check
        %p231 = pneg %p34
      $region38: #{fsa_forward.2} parent=35 // pred_check_branch
        %233 = sbr.rel (%p231) target = $region40
      $region39: #{fsa_forward.2} parent=35 // pred_region
        %p234 = scmp.lt.s32.totalorder %s14, 1
        %s235 = scalar_select %p234, %s14, 1
        %s236 = smul.addr %s235, 16
        %s237 = smul.addr %s236, 8
        %s238 = scalar_lea.vmem %s0, %s237
      $region40: #{fsa_forward.2} parent=35 // pred_fallthru
        _
    $region36: #{fsa_forward.2} parent=5 // pred_fallthru
      _
    %p239 = scmp.le.s32.totalorder 1, %s14
    %p240 = scmp.lt.s32.totalorder %s14, 3
    %p241 = pnand %p239, %p240
    %p242 = pneg %p241
    // Predicated region
    $region41: #{fsa_forward.2} parent=5 // pred_check
      _
    $region42: #{fsa_forward.2} parent=5 // pred_check_branch
      %244 = sbr.rel (%p241) target = $region44
    $region43: #{fsa_forward.2} parent=5 // pred_region
      %s245 = ssub.s32 %s14, 1
      %p246 = scmp.lt.s32.totalorder %s19, 1
      %s247 = scalar_select %p246, %s19, 1
      %s248 = smul.addr %s247, 16
      %s249 = smul.addr %s248, 8
      %s250 = scalar_lea.vmem %s0, %s249
      %p251 = pneg %p40
      %p252 = pneg %p37
      %p253 = pneg %p61
      %p254 = pneg %p58
      %p255 = pneg %p82
      %p256 = pneg %p79
      %p257 = pneg %p103
      %p258 = pneg %p100
      %p259 = pneg %p124
      %p260 = pneg %p121
      %p261 = pneg %p145
      %p262 = pneg %p142
      %p263 = pneg %p171
      %p264 = pneg %p168
      %p265 = scmp.lt.s32.totalorder %s19, 1
      %s266 = scalar_select %p265, %s19, 1
      %s267 = smul.addr %s266, 16
      %s268 = smul.addr %s267, 4
      %s269 = scalar_lea.vmem %s6, %s268
      %p270 = pneg %p197
      %p271 = pneg %p194
      %p272 = scmp.lt.s32.totalorder %s19, 1
      %s273 = scalar_select %p272, %s19, 1
      %s274 = smul.addr %s273, 16
      %s275 = smul.addr %s274, 4
      %s276 = scalar_lea.vmem %s7, %s275
      %p277 = scmp.lt.s32.totalorder %s19, 1
      %s278 = scalar_select %p277, %s19, 1
      %s279 = smul.addr %s278, 16
      %s280 = smul.addr %s279, 8
      %s281 = scalar_lea.vmem %s0, %s280
      %p282 = scmp.lt.s32.totalorder %s19, 1
      %s283 = scalar_select %p282, %s19, 1
      %s284 = smul.addr %s283, 16
      %s285 = smul.addr %s284, 4
      %s286 = scalar_lea.vmem %s6, %s285
      %p287 = scmp.lt.s32.totalorder %s19, 1
      %s288 = scalar_select %p287, %s19, 1
      %s289 = smul.addr %s288, 16
      %s290 = smul.addr %s289, 4
      %s291 = scalar_lea.vmem %s7, %s290
      %v293 = vld [vmem:[%s281] sm:$0xff]
      %v294 = vld [vmem:[%s281 + $0x8] sm:$0xff]
      %v295 = vld [vmem:[%s281 + $0x10] sm:$0xff]
      %v296 = vld [vmem:[%s281 + $0x18] sm:$0xff]
      %v297 = vld [vmem:[%s281 + $0x20] sm:$0xff]
      %v298 = vld [vmem:[%s281 + $0x28] sm:$0xff]
      %v299 = vld [vmem:[%s281 + $0x30] sm:$0xff]
      %v300 = vld [vmem:[%s281 + $0x38] sm:$0xff]
      %s301 = scalar_lea.vmem %s281, 64
      %v302 = vld [vmem:[%s301] sm:$0xff]
      %v303 = vld [vmem:[%s301 + $0x8] sm:$0xff]
      %v304 = vld [vmem:[%s301 + $0x10] sm:$0xff]
      %v305 = vld [vmem:[%s301 + $0x18] sm:$0xff]
      %v306 = vld [vmem:[%s301 + $0x20] sm:$0xff]
      %v307 = vld [vmem:[%s301 + $0x28] sm:$0xff]
      %v308 = vld [vmem:[%s301 + $0x30] sm:$0xff]
      %v309 = vld [vmem:[%s301 + $0x38] sm:$0xff]
      %v310 = vld [vmem:[%s3] sm:$0xff]
      %vm311 = vcmask 261120
      %v313 = vsel %vm311, %v310, 0
      %315 = vmatprep.subr.mxu0 %v294
      %316 = vmatpush1.msra.mxu0 %v293
      %317 = vmatprep.subr.mxu0 %v296
      %318 = vmatpush1.msra.mxu0 %v295
      %319 = vmatprep.subr.mxu0 %v298
      %320 = vmatpush1.msra.mxu0 %v297
      %321 = vmatprep.subr.mxu0 %v300
      %322 = vmatpush1.msra.mxu0 %v299
      %323 = vmatprep.subr.mxu0 0.0
      %324 = vmatpush1.msra.mxu0 0.0
      %325 = vmatprep.subr.mxu0 0.0
      %326 = vmatpush1.msra.mxu0 0.0
      %327 = vmatprep.subr.mxu0 0.0
      %328 = vmatpush1.msra.mxu0 0.0
      %329 = vmatprep.subr.mxu0 0.0
      %330 = vmatpush1.msra.mxu0 0.0
      %331 = vmatprep.subr.mxu0 0.0
      %332 = vmatpush1.msra.mxu0 0.0
      %333 = vmatprep.subr.mxu0 0.0
      %334 = vmatpush1.msra.mxu0 0.0
      %335 = vmatprep.subr.mxu0 0.0
      %336 = vmatpush1.msra.mxu0 0.0
      %337 = vmatprep.subr.mxu0 0.0
      %338 = vmatpush1.msra.mxu0 0.0
      %339 = vmatprep.subr.mxu0 0.0
      %340 = vmatpush1.msra.mxu0 0.0
      %341 = vmatprep.subr.mxu0 0.0
      %342 = vmatpush1.msra.mxu0 0.0
      %343 = vmatprep.subr.mxu0 0.0
      %344 = vmatpush1.msra.mxu0 0.0
      %345 = vmatprep.subr.mxu0 0.0
      %346 = vmatpush1.msra.mxu0 0.0
      %347 = vmatprep.subr.mxu0 0.0
      %348 = vmatpush1.msra.mxu0 0.0
      %349 = vmatprep.subr.mxu0 0.0
      %350 = vmatpush1.msra.mxu0 0.0
      %351 = vmatprep.subr.mxu0 0.0
      %352 = vmatpush1.msra.mxu0 0.0
      %353 = vmatprep.subr.mxu0 0.0
      %354 = vmatpush1.msra.mxu0 0.0
      %355 = vmatprep.subr.mxu0 0.0
      %356 = vmatpush1.msra.mxu0 0.0
      %357 = vmatprep.subr.mxu0 0.0
      %358 = vmatpush1.msra.mxu0 0.0
      %359 = vmatprep.subr.mxu0 0.0
      %360 = vmatpush1.msra.mxu0 0.0
      %361 = vmatprep.subr.mxu0 0.0
      %362 = vmatpush1.msra.mxu0 0.0
      %363 = vmatprep.subr.mxu0 0.0
      %364 = vmatpush1.msra.mxu0 0.0
      %365 = vmatprep.subr.mxu0 0.0
      %366 = vmatpush1.msra.mxu0 0.0
      %367 = vmatprep.subr.mxu0 0.0
      %368 = vmatpush1.msra.mxu0 0.0
      %369 = vmatprep.subr.mxu0 0.0
      %370 = vmatpush1.msra.mxu0 0.0
      %371 = vmatprep.subr.mxu0 0.0
      %372 = vmatpush1.msra.mxu0 0.0
      %373 = vmatprep.subr.mxu0 0.0
      %374 = vmatpush1.msra.mxu0 0.0
      %375 = vmatprep.subr.mxu0 0.0
      %376 = vmatpush1.msra.mxu0 0.0
      %377 = vmatprep.subr.mxu0 0.0
      %378 = vmatpush1.msra.mxu0 0.0
      %379 = vmatprep.mubr.f32.mxu0 0.0
      %380 = vmatmul.mubr.f32.gmra.mrb[0].mxu0 %v313
      %v381 = vpop.f32.mrb[0].mxu0
      %v382 = vadd.f32 0.0, %v381
      %v383 = vpop.f32.mrb[0].mxu0
      %v384 = vadd.f32 0.0, %v383
      %385 = vdwg.mxu0
      %v386 = vmax.f32 %v382, 0.0
      %v387 = vmax.f32 %v384, 0.0
      %v388 = vld [vmem:[%s4] sm:$0xff]
      %v389 = vld [vmem:[%s4 + $0x8] sm:$0xff]
      %v390 = vld [vmem:[%s4 + $0x10] sm:$0xff]
      %v391 = vld [vmem:[%s4 + $0x18] sm:$0xff]
      %v392 = vld [vmem:[%s5] sm:$0xff]
      %v393 = vld [vmem:[%s5 + $0x8] sm:$0xff]
      %v394 = vld [vmem:[%s5 + $0x10] sm:$0xff]
      %v395 = vld [vmem:[%s5 + $0x18] sm:$0xff]
      %397 = vset.pattern.permute.xlu0 0
      %398 = vperm.xlu0 %397, %v392
      %v399 = vpop.permute.xlu0 %398
      %402 = vset.pattern.permute.xlu0 0
      %403 = vperm.xlu0 %402, %v393
      %v404 = vpop.permute.xlu0 %403
      %407 = vset.pattern.permute.xlu0 0
      %408 = vperm.xlu0 %407, %v394
      %v409 = vpop.permute.xlu0 %408
      %412 = vset.pattern.permute.xlu0 0
      %413 = vperm.xlu0 %412, %v395
      %v414 = vpop.permute.xlu0 %413
      %vm416 = vcmask 64512
      %v418 = vsel %vm416, %v388, 0
      %v421 = vsel %vm416, %v389, 0
      %v424 = vsel %vm416, %v390, 0
      %v427 = vsel %vm416, %v391, 0
      %429 = vmatprep.subr.mxu0 %v387
      %430 = vmatpush1.msra.mxu0 %v386
      %431 = vmatprep.subr.mxu0 0.0
      %432 = vmatpush1.msra.mxu0 0.0
      %433 = vmatprep.subr.mxu0 0.0
      %434 = vmatpush1.msra.mxu0 0.0
      %435 = vmatprep.subr.mxu0 0.0
      %436 = vmatpush1.msra.mxu0 0.0
      %437 = vmatprep.subr.mxu0 0.0
      %438 = vmatpush1.msra.mxu0 0.0
      %439 = vmatprep.subr.mxu0 0.0
      %440 = vmatpush1.msra.mxu0 0.0
      %441 = vmatprep.subr.mxu0 0.0
      %442 = vmatpush1.msra.mxu0 0.0
      %443 = vmatprep.subr.mxu0 0.0
      %444 = vmatpush1.msra.mxu0 0.0
      %445 = vmatprep.subr.mxu0 0.0
      %446 = vmatpush1.msra.mxu0 0.0
      %447 = vmatprep.subr.mxu0 0.0
      %448 = vmatpush1.msra.mxu0 0.0
      %449 = vmatprep.subr.mxu0 0.0
      %450 = vmatpush1.msra.mxu0 0.0
      %451 = vmatprep.subr.mxu0 0.0
      %452 = vmatpush1.msra.mxu0 0.0
      %453 = vmatprep.subr.mxu0 0.0
      %454 = vmatpush1.msra.mxu0 0.0
      %455 = vmatprep.subr.mxu0 0.0
      %456 = vmatpush1.msra.mxu0 0.0
      %457 = vmatprep.subr.mxu0 0.0
      %458 = vmatpush1.msra.mxu0 0.0
      %459 = vmatprep.subr.mxu0 0.0
      %460 = vmatpush1.msra.mxu0 0.0
      %461 = vmatprep.subr.mxu0 0.0
      %462 = vmatpush1.msra.mxu0 0.0
      %463 = vmatprep.subr.mxu0 0.0
      %464 = vmatpush1.msra.mxu0 0.0
      %465 = vmatprep.subr.mxu0 0.0
      %466 = vmatpush1.msra.mxu0 0.0
      %467 = vmatprep.subr.mxu0 0.0
      %468 = vmatpush1.msra.mxu0 0.0
      %469 = vmatprep.subr.mxu0 0.0
      %470 = vmatpush1.msra.mxu0 0.0
      %471 = vmatprep.subr.mxu0 0.0
      %472 = vmatpush1.msra.mxu0 0.0
      %473 = vmatprep.subr.mxu0 0.0
      %474 = vmatpush1.msra.mxu0 0.0
      %475 = vmatprep.subr.mxu0 0.0
      %476 = vmatpush1.msra.mxu0 0.0
      %477 = vmatprep.subr.mxu0 0.0
      %478 = vmatpush1.msra.mxu0 0.0
      %479 = vmatprep.subr.mxu0 0.0
      %480 = vmatpush1.msra.mxu0 0.0
      %481 = vmatprep.subr.mxu0 0.0
      %482 = vmatpush1.msra.mxu0 0.0
      %483 = vmatprep.subr.mxu0 0.0
      %484 = vmatpush1.msra.mxu0 0.0
      %485 = vmatprep.subr.mxu0 0.0
      %486 = vmatpush1.msra.mxu0 0.0
      %487 = vmatprep.subr.mxu0 0.0
      %488 = vmatpush1.msra.mxu0 0.0
      %489 = vmatprep.subr.mxu0 0.0
      %490 = vmatpush1.msra.mxu0 0.0
      %491 = vmatprep.subr.mxu0 0.0
      %492 = vmatpush1.msra.mxu0 0.0
      %493 = vmatprep.mubr.f32.mxu0 0.0
      %494 = vmatmul.mubr.f32.gmra.mrb[0].mxu0 %v418
      %v495 = vpop.f32.mrb[0].mxu0
      %v496 = vadd.f32 %v399, %v495
      %v497 = vpop.f32.mrb[0].mxu0
      %v498 = vadd.f32 %v399, %v497
      %499 = vmatprep.mubr.f32.mxu0 0.0
      %500 = vmatmul.mubr.f32.gmra.mrb[0].mxu0 %v421
      %v501 = vpop.f32.mrb[0].mxu0
      %v502 = vadd.f32 %v404, %v501
      %v503 = vpop.f32.mrb[0].mxu0
      %v504 = vadd.f32 %v404, %v503
      %505 = vmatprep.mubr.f32.mxu0 0.0
      %506 = vmatmul.mubr.f32.gmra.mrb[0].mxu0 %v424
      %v507 = vpop.f32.mrb[0].mxu0
      %v508 = vadd.f32 %v409, %v507
      %v509 = vpop.f32.mrb[0].mxu0
      %v510 = vadd.f32 %v409, %v509
      %511 = vmatprep.mubr.f32.mxu0 0.0
      %512 = vmatmul.mubr.f32.gmra.mrb[0].mxu0 %v427
      %v513 = vpop.f32.mrb[0].mxu0
      %v514 = vadd.f32 %v414, %v513
      %v515 = vpop.f32.mrb[0].mxu0
      %v516 = vadd.f32 %v414, %v515
      %517 = vdwg.mxu0
      %v518 = vxor.u32 %v496, 2147483648
      %v519 = vxor.u32 %v498, 2147483648
      %v520 = vxor.u32 %v502, 2147483648
      %v521 = vxor.u32 %v504, 2147483648
      %v522 = vxor.u32 %v508, 2147483648
      %v523 = vxor.u32 %v510, 2147483648
      %v524 = vxor.u32 %v514, 2147483648
      %v525 = vxor.u32 %v516, 2147483648
      %v526 = vmul.f32 %v518, 1.442695
      %v527 = vpow.pop %v526
      %v528 = vmul.f32 %v519, 1.442695
      %v529 = vpow.pop %v528
      %v530 = vmul.f32 %v520, 1.442695
      %v531 = vpow.pop %v530
      %v532 = vmul.f32 %v521, 1.442695
      %v533 = vpow.pop %v532
      %v534 = vmul.f32 %v522, 1.442695
      %v535 = vpow.pop %v534
      %v536 = vmul.f32 %v523, 1.442695
      %v537 = vpow.pop %v536
      %v538 = vmul.f32 %v524, 1.442695
      %v539 = vpow.pop %v538
      %v540 = vmul.f32 %v525, 1.442695
      %v541 = vpow.pop %v540
      %v542 = vadd.f32 %v527, 1.0
      %v543 = vadd.f32 %v529, 1.0
      %v544 = vadd.f32 %v531, 1.0
      %v545 = vadd.f32 %v533, 1.0
      %v546 = vadd.f32 %v535, 1.0
      %v547 = vadd.f32 %v537, 1.0
      %v548 = vadd.f32 %v539, 1.0
      %v549 = vadd.f32 %v541, 1.0
      %v550 = vrcp.pop %v542
      %v551 = vmul.f32 1.0, %v550
      %v552 = vrcp.pop %v543
      %v553 = vmul.f32 1.0, %v552
      %v554 = vrcp.pop %v544
      %v555 = vmul.f32 1.0, %v554
      %v556 = vrcp.pop %v545
      %v557 = vmul.f32 1.0, %v556
      %v558 = vrcp.pop %v546
      %v559 = vmul.f32 1.0, %v558
      %v560 = vrcp.pop %v547
      %v561 = vmul.f32 1.0, %v560
      %v562 = vrcp.pop %v548
      %v563 = vmul.f32 1.0, %v562
      %v564 = vrcp.pop %v549
      %v565 = vmul.f32 1.0, %v564
      %v566 = vmul.f32 %v551, %v293
      %v567 = vmul.f32 %v553, %v294
      %v568 = vmul.f32 %v555, %v295
      %v569 = vmul.f32 %v557, %v296
      %v570 = vmul.f32 %v559, %v297
      %v571 = vmul.f32 %v561, %v298
      %v572 = vmul.f32 %v563, %v299
      %v573 = vmul.f32 %v565, %v300
      %v574 = vpack.c.bf16 %v568, %v566
      %v575 = vpack.c.bf16 %v569, %v567
      %v576 = vpack.c.bf16 %v572, %v570
      %v577 = vpack.c.bf16 %v573, %v571
      %v582 = vunpack.c.l.b16 %v574
      %v583 = vunpack.c.l.b16 %v575
      %v584 = vunpack.c.h.b16 %v574
      %v585 = vunpack.c.h.b16 %v575
      %v586 = vunpack.c.l.b16 %v576
      %v587 = vunpack.c.l.b16 %v577
      %v588 = vunpack.c.h.b16 %v576
      %v589 = vunpack.c.h.b16 %v577
      %v590 = vpack.c.b16 %v583, %v582
      %v591 = vpack.c.b16 %v585, %v584
      %v592 = vpack.c.b16 %v587, %v586
      %v593 = vpack.c.b16 %v589, %v588
      %598 = vst [vmem:[%s291] sm:$0xff] %v590
      %599 = vst [vmem:[%s291 + $0x8] sm:$0xff] %v591
      %600 = vst [vmem:[%s291 + $0x10] sm:$0xff] %v592
      %601 = vst [vmem:[%s291 + $0x18] sm:$0xff] %v593
      %v602 = vmul.f32 %v551, %v302
      %v603 = vmul.f32 %v553, %v303
      %v604 = vmul.f32 %v555, %v304
      %v605 = vmul.f32 %v557, %v305
      %v606 = vmul.f32 %v559, %v306
      %v607 = vmul.f32 %v561, %v307
      %v608 = vmul.f32 %v563, %v308
      %v609 = vmul.f32 %v565, %v309
      %v610 = vpack.c.bf16 %v604, %v602
      %v611 = vpack.c.bf16 %v605, %v603
      %v612 = vpack.c.bf16 %v608, %v606
      %v613 = vpack.c.bf16 %v609, %v607
      %v618 = vunpack.c.l.b16 %v610
      %v619 = vunpack.c.l.b16 %v611
      %v620 = vunpack.c.h.b16 %v610
      %v621 = vunpack.c.h.b16 %v611
      %v622 = vunpack.c.l.b16 %v612
      %v623 = vunpack.c.l.b16 %v613
      %v624 = vunpack.c.h.b16 %v612
      %v625 = vunpack.c.h.b16 %v613
      %v626 = vpack.c.b16 %v619, %v618
      %v627 = vpack.c.b16 %v621, %v620
      %v628 = vpack.c.b16 %v623, %v622
      %v629 = vpack.c.b16 %v625, %v624
      %s634 = scalar_lea.vmem %s291, 32
      %635 = vst [vmem:[%s634] sm:$0xff] %v626
      %636 = vst [vmem:[%s634 + $0x8] sm:$0xff] %v627
      %637 = vst [vmem:[%s634 + $0x10] sm:$0xff] %v628
      %638 = vst [vmem:[%s634 + $0x18] sm:$0xff] %v629
      %v639 = vmul.f32 %v293, %v293
      %v640 = vmul.f32 %v294, %v294
      %v641 = vmul.f32 %v295, %v295
      %v642 = vmul.f32 %v296, %v296
      %v643 = vmul.f32 %v297, %v297
      %v644 = vmul.f32 %v298, %v298
      %v645 = vmul.f32 %v299, %v299
      %v646 = vmul.f32 %v300, %v300
      %v647 = vmul.f32 %v302, %v302
      %v648 = vmul.f32 %v303, %v303
      %v649 = vmul.f32 %v304, %v304
      %v650 = vmul.f32 %v305, %v305
      %v651 = vmul.f32 %v306, %v306
      %v652 = vmul.f32 %v307, %v307
      %v653 = vmul.f32 %v308, %v308
      %v654 = vmul.f32 %v309, %v309
      %v655 = vadd.f32 %v639, %v647
      %v656 = vadd.f32 %v640, %v648
      %v657 = vadd.f32 %v641, %v649
      %v658 = vadd.f32 %v642, %v650
      %v659 = vadd.f32 %v643, %v651
      %v660 = vadd.f32 %v644, %v652
      %v661 = vadd.f32 %v645, %v653
      %v662 = vadd.f32 %v646, %v654
      %v663 = vadd.f32 %v655, %v656
      %664 = vadd.xlane.f32.xlu0 %v663
      %v665 = vpop.xlane.xlu0 %664
      %v666 = vadd.f32 %v657, %v658
      %667 = vadd.xlane.f32.xlu0 %v666
      %v668 = vpop.xlane.xlu0 %667
      %v669 = vadd.f32 %v659, %v660
      %670 = vadd.xlane.f32.xlu0 %v669
      %v671 = vpop.xlane.xlu0 %670
      %v672 = vadd.f32 %v661, %v662
      %673 = vadd.xlane.f32.xlu0 %v672
      %v674 = vpop.xlane.xlu0 %673
      %v675 = vmax.f32 %v665, 1e-24
      %v676 = vmax.f32 %v668, 1e-24
      %v677 = vmax.f32 %v671, 1e-24
      %v678 = vmax.f32 %v674, 1e-24
      %v679 = vrsqrt.pop %v675
      %v680 = vrsqrt.pop %v676
      %v681 = vrsqrt.pop %v677
      %v682 = vrsqrt.pop %v678
      %v683 = vmul.f32 %v293, %v679
      %v684 = vmul.f32 %v294, %v679
      %v685 = vmul.f32 %v295, %v680
      %v686 = vmul.f32 %v296, %v680
      %v687 = vmul.f32 %v297, %v681
      %v688 = vmul.f32 %v298, %v681
      %v689 = vmul.f32 %v299, %v682
      %v690 = vmul.f32 %v300, %v682
      %v691 = vpack.c.bf16 %v685, %v683
      %v692 = vpack.c.bf16 %v686, %v684
      %v693 = vpack.c.bf16 %v689, %v687
      %v694 = vpack.c.bf16 %v690, %v688
      %v695 = vmul.f32 %v302, %v679
      %v696 = vmul.f32 %v303, %v679
      %v697 = vmul.f32 %v304, %v680
      %v698 = vmul.f32 %v305, %v680
      %v699 = vmul.f32 %v306, %v681
      %v700 = vmul.f32 %v307, %v681
      %v701 = vmul.f32 %v308, %v682
      %v702 = vmul.f32 %v309, %v682
      %v703 = vpack.c.bf16 %v697, %v695
      %v704 = vpack.c.bf16 %v698, %v696
      %v705 = vpack.c.bf16 %v701, %v699
      %v706 = vpack.c.bf16 %v702, %v700
      %707 = vmatprep.subr.bf16.mxu0 %v692
      %708 = vmatpush1.bf16.xpose.msra.mxu0 %v691
      %709 = vmatprep.subr.bf16.mxu0 %v694
      %710 = vmatpush1.bf16.xpose.msra.mxu0 %v693
      %711 = vmatprep.subr.bf16.mxu0 %v704
      %712 = vmatpush1.bf16.xpose.msra.mxu0 %v703
      %713 = vmatprep.subr.bf16.mxu0 %v706
      %714 = vmatpush1.bf16.xpose.msra.mxu0 %v705
      %715 = vmatprep.subr.bf16.mxu0 0
      %716 = vmatpush1.bf16.xpose.msra.mxu0 0
      %717 = vmatprep.subr.bf16.mxu0 0
      %718 = vmatpush1.bf16.xpose.msra.mxu0 0
      %719 = vmatprep.subr.bf16.mxu0 0
      %720 = vmatpush1.bf16.xpose.msra.mxu0 0
      %721 = vmatprep.subr.bf16.mxu0 0
      %722 = vmatpush1.bf16.xpose.msra.mxu0 0
      %723 = vmatprep.subr.bf16.mxu0 0
      %724 = vmatpush1.bf16.xpose.msra.mxu0 0
      %725 = vmatprep.subr.bf16.mxu0 0
      %726 = vmatpush1.bf16.xpose.msra.mxu0 0
      %727 = vmatprep.subr.bf16.mxu0 0
      %728 = vmatpush1.bf16.xpose.msra.mxu0 0
      %729 = vmatprep.subr.bf16.mxu0 0
      %730 = vmatpush1.bf16.xpose.msra.mxu0 0
      %731 = vmatprep.subr.bf16.mxu0 0
      %732 = vmatpush1.bf16.xpose.msra.mxu0 0
      %733 = vmatprep.subr.bf16.mxu0 0
      %734 = vmatpush1.bf16.xpose.msra.mxu0 0
      %735 = vmatprep.subr.bf16.mxu0 0
      %736 = vmatpush1.bf16.xpose.msra.mxu0 0
      %737 = vmatprep.subr.bf16.mxu0 0
      %738 = vmatpush1.bf16.xpose.msra.mxu0 0
      %739 = vmatprep.mubr.bf16.mxu0 %v692
      %740 = vmatmul.mubr.bf16.gmra.mrb[0].mxu0 %v691
      %v741 = vpop.f32.mrb[0].mxu0
      %v742 = vadd.f32 0.0, %v741
      %v743 = vpop.f32.mrb[0].mxu0
      %v744 = vpop.f32.mrb[0].mxu0
      %v745 = vadd.f32 0.0, %v744
      %v746 = vpop.f32.mrb[0].mxu0
      %747 = vmatprep.mubr.bf16.mxu0 %v694
      %748 = vmatmul.mubr.bf16.gmra.mrb[0].mxu0 %v693
      %v749 = vpop.f32.mrb[0].mxu0
      %v750 = vadd.f32 0.0, %v749
      %v751 = vpop.f32.mrb[0].mxu0
      %v752 = vpop.f32.mrb[0].mxu0
      %v753 = vadd.f32 0.0, %v752
      %v754 = vpop.f32.mrb[0].mxu0
      %755 = vmatprep.mubr.bf16.mxu0 %v704
      %756 = vmatmul.mubr.bf16.gmra.mrb[0].mxu0 %v703
      %v757 = vpop.f32.mrb[0].mxu0
      %v758 = vadd.f32 0.0, %v757
      %v759 = vpop.f32.mrb[0].mxu0
      %v760 = vpop.f32.mrb[0].mxu0
      %v761 = vadd.f32 0.0, %v760
      %v762 = vpop.f32.mrb[0].mxu0
      %763 = vmatprep.mubr.bf16.mxu0 %v706
      %764 = vmatmul.mubr.bf16.gmra.mrb[0].mxu0 %v705
      %v765 = vpop.f32.mrb[0].mxu0
      %v766 = vadd.f32 0.0, %v765
      %v767 = vpop.f32.mrb[0].mxu0
      %v768 = vpop.f32.mrb[0].mxu0
      %v769 = vadd.f32 0.0, %v768
      %v770 = vpop.f32.mrb[0].mxu0
      %771 = vdwg.mxu0
      %776 = vrot.lane.b32.xlu0 %v758, 96
      %v777 = vpop.permute.xlu0 %776
      %778 = vrot.lane.b32.xlu0 %v761, 96
      %v779 = vpop.permute.xlu0 %778
      %780 = vrot.lane.b32.xlu0 %v766, 96
      %v781 = vpop.permute.xlu0 %780
      %782 = vrot.lane.b32.xlu0 %v769, 96
      %v783 = vpop.permute.xlu0 %782
      %v788 = vsub.f32 %v742, %v777
      %v789 = vsub.f32 %v745, %v779
      %v790 = vsub.f32 %v750, %v781
      %v791 = vsub.f32 %v753, %v783
      %792 = vrot.lane.b32.xlu0 %v758, 32
      %v793 = vpop.permute.xlu0 %792
      %794 = vrot.lane.b32.xlu0 %v761, 32
      %v795 = vpop.permute.xlu0 %794
      %796 = vrot.lane.b32.xlu0 %v766, 32
      %v797 = vpop.permute.xlu0 %796
      %798 = vrot.lane.b32.xlu0 %v769, 32
      %v799 = vpop.permute.xlu0 %798
      %v804 = vadd.f32 %v742, %v793
      %v805 = vadd.f32 %v745, %v795
      %v806 = vadd.f32 %v750, %v797
      %v807 = vadd.f32 %v753, %v799
      %v808 = vld [vmem:[%s1] sm:$0xff]
      %v809 = vld [vmem:[%s1 + $0x8] sm:$0xff]
      %v810 = vld [vmem:[%s1 + $0x10] sm:$0xff]
      %v811 = vld [vmem:[%s1 + $0x18] sm:$0xff]
      %v812 = vld [vmem:[%s2] sm:$0xff]
      %v813 = vld [vmem:[%s2 + $0x8] sm:$0xff]
      %v814 = vld [vmem:[%s2 + $0x10] sm:$0xff]
      %v815 = vld [vmem:[%s2 + $0x18] sm:$0xff]
      %v816 = vmul.f32 %v788, %v808
      %v817 = vmul.f32 %v789, %v809
      %v818 = vmul.f32 %v790, %v810
      %v819 = vmul.f32 %v791, %v811
      %v820 = vadd.f32 %v816, %v812
      %v821 = vadd.f32 %v817, %v813
      %v822 = vadd.f32 %v818, %v814
      %v823 = vadd.f32 %v819, %v815
      %v824 = vsel %vm311, %v820, -inf
      %825 = vmax.xlane.f32.xlu0 %v824
      %v826 = vpop.xlane.xlu0 %825
      %v827 = vsel %vm311, %v821, -inf
      %828 = vmax.xlane.f32.xlu0 %v827
      %v829 = vpop.xlane.xlu0 %828
      %v830 = vsel %vm311, %v822, -inf
      %831 = vmax.xlane.f32.xlu0 %v830
      %v832 = vpop.xlane.xlu0 %831
      %v833 = vsel %vm311, %v823, -inf
      %834 = vmax.xlane.f32.xlu0 %v833
      %v835 = vpop.xlane.xlu0 %834
      %v836 = vsub.f32 %v820, %v826
      %v837 = vsub.f32 %v821, %v829
      %v838 = vsub.f32 %v822, %v832
      %v839 = vsub.f32 %v823, %v835
      %v840 = vmul.f32 %v836, 1.442695
      %v841 = vpow.pop %v840
      %v842 = vmul.f32 %v837, 1.442695
      %v843 = vpow.pop %v842
      %v844 = vmul.f32 %v838, 1.442695
      %v845 = vpow.pop %v844
      %v846 = vmul.f32 %v839, 1.442695
      %v847 = vpow.pop %v846
      %v848 = vsel %vm311, %v841, 0.0
      %849 = vadd.xlane.f32.xlu0 %v848
      %v850 = vpop.xlane.xlu0 %849
      %v851 = vsel %vm311, %v843, 0.0
      %852 = vadd.xlane.f32.xlu0 %v851
      %v853 = vpop.xlane.xlu0 %852
      %v854 = vsel %vm311, %v845, 0.0
      %855 = vadd.xlane.f32.xlu0 %v854
      %v856 = vpop.xlane.xlu0 %855
      %v857 = vsel %vm311, %v847, 0.0
      %858 = vadd.xlane.f32.xlu0 %v857
      %v859 = vpop.xlane.xlu0 %858
      %v860 = vrcp.pop %v850
      %v861 = vrcp.pop %v853
      %v862 = vrcp.pop %v856
      %v863 = vrcp.pop %v859
      %v864 = vmul.f32 %v841, %v860
      %v865 = vmul.f32 %v843, %v861
      %v866 = vmul.f32 %v845, %v862
      %v867 = vmul.f32 %v847, %v863
      %v868 = vpack.c.bf16 %v865, %v864
      %v869 = vpack.c.bf16 %v867, %v866
      %874 = vrot.lane.b32.xlu0 %v808, 32
      %v875 = vpop.permute.xlu0 %874
      %876 = vrot.lane.b32.xlu0 %v809, 32
      %v877 = vpop.permute.xlu0 %876
      %878 = vrot.lane.b32.xlu0 %v810, 32
      %v879 = vpop.permute.xlu0 %878
      %880 = vrot.lane.b32.xlu0 %v811, 32
      %v881 = vpop.permute.xlu0 %880
      %v886 = vmul.f32 %v804, %v875
      %v887 = vmul.f32 %v805, %v877
      %v888 = vmul.f32 %v806, %v879
      %v889 = vmul.f32 %v807, %v881
      %894 = vrot.lane.b32.xlu0 %v812, 32
      %v895 = vpop.permute.xlu0 %894
      %896 = vrot.lane.b32.xlu0 %v813, 32
      %v897 = vpop.permute.xlu0 %896
      %898 = vrot.lane.b32.xlu0 %v814, 32
      %v899 = vpop.permute.xlu0 %898
      %900 = vrot.lane.b32.xlu0 %v815, 32
      %v901 = vpop.permute.xlu0 %900
      %v906 = vadd.f32 %v886, %v895
      %v907 = vadd.f32 %v887, %v897
      %v908 = vadd.f32 %v888, %v899
      %v909 = vadd.f32 %v889, %v901
      %vm910 = vcmask 523520
      %v911 = vsel %vm910, %v906, -inf
      %912 = vmax.xlane.f32.xlu0 %v911
      %v913 = vpop.xlane.xlu0 %912
      %v914 = vsel %vm910, %v907, -inf
      %915 = vmax.xlane.f32.xlu0 %v914
      %v916 = vpop.xlane.xlu0 %915
      %v917 = vsel %vm910, %v908, -inf
      %918 = vmax.xlane.f32.xlu0 %v917
      %v919 = vpop.xlane.xlu0 %918
      %v920 = vsel %vm910, %v909, -inf
      %921 = vmax.xlane.f32.xlu0 %v920
      %v922 = vpop.xlane.xlu0 %921
      %v923 = vsub.f32 %v906, %v913
      %v924 = vsub.f32 %v907, %v916
      %v925 = vsub.f32 %v908, %v919
      %v926 = vsub.f32 %v909, %v922
      %v927 = vmul.f32 %v923, 1.442695
      %v928 = vpow.pop %v927
      %v929 = vmul.f32 %v924, 1.442695
      %v930 = vpow.pop %v929
      %v931 = vmul.f32 %v925, 1.442695
      %v932 = vpow.pop %v931
      %v933 = vmul.f32 %v926, 1.442695
      %v934 = vpow.pop %v933
      %939 = vrot.lane.b32.xlu0 %v928, 96
      %v940 = vpop.permute.xlu0 %939
      %941 = vrot.lane.b32.xlu0 %v930, 96
      %v942 = vpop.permute.xlu0 %941
      %943 = vrot.lane.b32.xlu0 %v932, 96
      %v944 = vpop.permute.xlu0 %943
      %945 = vrot.lane.b32.xlu0 %v934, 96
      %v946 = vpop.permute.xlu0 %945
      %v951 = vsel %vm311, %v940, 0.0
      %952 = vadd.xlane.f32.xlu0 %v951
      %v953 = vpop.xlane.xlu0 %952
      %v954 = vsel %vm311, %v942, 0.0
      %955 = vadd.xlane.f32.xlu0 %v954
      %v956 = vpop.xlane.xlu0 %955
      %v957 = vsel %vm311, %v944, 0.0
      %958 = vadd.xlane.f32.xlu0 %v957
      %v959 = vpop.xlane.xlu0 %958
      %v960 = vsel %vm311, %v946, 0.0
      %961 = vadd.xlane.f32.xlu0 %v960
      %v962 = vpop.xlane.xlu0 %961
      %v963 = vrcp.pop %v953
      %v964 = vrcp.pop %v956
      %v965 = vrcp.pop %v959
      %v966 = vrcp.pop %v962
      %v967 = vmul.f32 %v928, %v963
      %v968 = vmul.f32 %v930, %v964
      %v969 = vmul.f32 %v932, %v965
      %v970 = vmul.f32 %v934, %v966
      %v971 = vpack.c.bf16 %v968, %v967
      %v972 = vpack.c.bf16 %v970, %v969
      %v973 = vpack.c.bf16 %v295, %v293
      %v974 = vpack.c.bf16 %v296, %v294
      %v975 = vpack.c.bf16 %v299, %v297
      %v976 = vpack.c.bf16 %v300, %v298
      %v977 = vpack.c.bf16 %v304, %v302
      %v978 = vpack.c.bf16 %v305, %v303
      %v979 = vpack.c.bf16 %v308, %v306
      %v980 = vpack.c.bf16 %v309, %v307
      %v983 = vsel %vm311, %v868, %v971
      %v986 = vsel %vm311, %v869, %v972
      %v987 = vsub.bf16 0, %v977
      %v988 = vsub.bf16 0, %v978
      %v989 = vsub.bf16 0, %v979
      %v990 = vsub.bf16 0, %v980
      %vm991 = vcmask 523264
      %v992 = vsel %vm991, %v983, 0
      %v994 = vsel %vm991, %v986, 0
      %996 = vmatprep.subr.bf16.mxu0 %v974
      %997 = vmatpush1.bf16.msra.mxu0 %v973
      %998 = vmatprep.subr.bf16.mxu0 %v976
      %999 = vmatpush1.bf16.msra.mxu0 %v975
      %1000 = vmatprep.subr.bf16.mxu0 %v988
      %1001 = vmatpush1.bf16.msra.mxu0 %v987
      %1002 = vmatprep.subr.bf16.mxu0 %v990
      %1003 = vmatpush1.bf16.msra.mxu0 %v989
      %1004 = vmatprep.subr.bf16.mxu0 0
      %1005 = vmatpush1.bf16.msra.mxu0 0
      %1006 = vmatprep.subr.bf16.mxu0 0
      %1007 = vmatpush1.bf16.msra.mxu0 0
      %1008 = vmatprep.subr.bf16.mxu0 0
      %1009 = vmatpush1.bf16.msra.mxu0 0
      %1010 = vmatprep.subr.bf16.mxu0 0
      %1011 = vmatpush1.bf16.msra.mxu0 0
      %1012 = vmatprep.subr.bf16.mxu0 0
      %1013 = vmatpush1.bf16.msra.mxu0 0
      %1014 = vmatprep.subr.bf16.mxu0 0
      %1015 = vmatpush1.bf16.msra.mxu0 0
      %1016 = vmatprep.subr.bf16.mxu0 0
      %1017 = vmatpush1.bf16.msra.mxu0 0
      %1018 = vmatprep.subr.bf16.mxu0 0
      %1019 = vmatpush1.bf16.msra.mxu0 0
      %1020 = vmatprep.subr.bf16.mxu0 0
      %1021 = vmatpush1.bf16.msra.mxu0 0
      %1022 = vmatprep.subr.bf16.mxu0 0
      %1023 = vmatpush1.bf16.msra.mxu0 0
      %1024 = vmatprep.subr.bf16.mxu0 0
      %1025 = vmatpush1.bf16.msra.mxu0 0
      %1026 = vmatprep.subr.bf16.mxu0 0
      %1027 = vmatpush1.bf16.msra.mxu0 0
      %1028 = vmatprep.mubr.bf16.mxu0 0
      %1029 = vmatmul.mubr.bf16.gmra.mrb[0].mxu0 %v992
      %v1030 = vpop.f32.mrb[0].mxu0
      %v1031 = vadd.f32 0.0, %v1030
      %v1032 = vpop.f32.mrb[0].mxu0
      %v1033 = vadd.f32 0.0, %v1032
      %v1034 = vpop.f32.mrb[0].mxu0
      %v1035 = vadd.f32 0.0, %v1034
      %v1036 = vpop.f32.mrb[0].mxu0
      %v1037 = vadd.f32 0.0, %v1036
      %1038 = vmatprep.mubr.bf16.mxu0 0
      %1039 = vmatmul.mubr.bf16.gmra.mrb[0].mxu0 %v994
      %v1040 = vpop.f32.mrb[0].mxu0
      %v1041 = vadd.f32 0.0, %v1040
      %v1042 = vpop.f32.mrb[0].mxu0
      %v1043 = vadd.f32 0.0, %v1042
      %v1044 = vpop.f32.mrb[0].mxu0
      %v1045 = vadd.f32 0.0, %v1044
      %v1046 = vpop.f32.mrb[0].mxu0
      %v1047 = vadd.f32 0.0, %v1046
      %1048 = vdwg.mxu0
      %v1049 = vpack.c.bf16 %v1035, %v1031
      %v1050 = vpack.c.bf16 %v1037, %v1033
      %v1051 = vpack.c.bf16 %v1045, %v1041
      %v1052 = vpack.c.bf16 %v1047, %v1043
      %v1057 = vunpack.c.l.b16 %v1049
      %v1058 = vunpack.c.l.b16 %v1050
      %v1059 = vunpack.c.h.b16 %v1049
      %v1060 = vunpack.c.h.b16 %v1050
      %v1061 = vunpack.c.l.b16 %v1051
      %v1062 = vunpack.c.l.b16 %v1052
      %v1063 = vunpack.c.h.b16 %v1051
      %v1064 = vunpack.c.h.b16 %v1052
      %v1065 = vpack.c.b16 %v1058, %v1057
      %v1066 = vpack.c.b16 %v1060, %v1059
      %v1067 = vpack.c.b16 %v1062, %v1061
      %v1068 = vpack.c.b16 %v1064, %v1063
      %1073 = vst [vmem:[%s286] sm:$0xff] %v1065
      %1074 = vst [vmem:[%s286 + $0x8] sm:$0xff] %v1066
      %1075 = vst [vmem:[%s286 + $0x10] sm:$0xff] %v1067
      %1076 = vst [vmem:[%s286 + $0x18] sm:$0xff] %v1068
      %1077 = vmatprep.subr.bf16.mxu0 %v978
      %1078 = vmatpush1.bf16.msra.mxu0 %v977
      %1079 = vmatprep.subr.bf16.mxu0 %v980
      %1080 = vmatpush1.bf16.msra.mxu0 %v979
      %1081 = vmatprep.subr.bf16.mxu0 %v974
      %1082 = vmatpush1.bf16.msra.mxu0 %v973
      %1083 = vmatprep.subr.bf16.mxu0 %v976
      %1084 = vmatpush1.bf16.msra.mxu0 %v975
      %1085 = vmatprep.subr.bf16.mxu0 0
      %1086 = vmatpush1.bf16.msra.mxu0 0
      %1087 = vmatprep.subr.bf16.mxu0 0
      %1088 = vmatpush1.bf16.msra.mxu0 0
      %1089 = vmatprep.subr.bf16.mxu0 0
      %1090 = vmatpush1.bf16.msra.mxu0 0
      %1091 = vmatprep.subr.bf16.mxu0 0
      %1092 = vmatpush1.bf16.msra.mxu0 0
      %1093 = vmatprep.subr.bf16.mxu0 0
      %1094 = vmatpush1.bf16.msra.mxu0 0
      %1095 = vmatprep.subr.bf16.mxu0 0
      %1096 = vmatpush1.bf16.msra.mxu0 0
      %1097 = vmatprep.subr.bf16.mxu0 0
      %1098 = vmatpush1.bf16.msra.mxu0 0
      %1099 = vmatprep.subr.bf16.mxu0 0
      %1100 = vmatpush1.bf16.msra.mxu0 0
      %1101 = vmatprep.subr.bf16.mxu0 0
      %1102 = vmatpush1.bf16.msra.mxu0 0
      %1103 = vmatprep.subr.bf16.mxu0 0
      %1104 = vmatpush1.bf16.msra.mxu0 0
      %1105 = vmatprep.subr.bf16.mxu0 0
      %1106 = vmatpush1.bf16.msra.mxu0 0
      %1107 = vmatprep.subr.bf16.mxu0 0
      %1108 = vmatpush1.bf16.msra.mxu0 0
      %1109 = vmatprep.mubr.bf16.mxu0 0
      %1110 = vmatmul.mubr.bf16.gmra.mrb[0].mxu0 %v992
      %v1111 = vpop.f32.mrb[0].mxu0
      %v1112 = vadd.f32 0.0, %v1111
      %v1113 = vpop.f32.mrb[0].mxu0
      %v1114 = vadd.f32 0.0, %v1113
      %v1115 = vpop.f32.mrb[0].mxu0
      %v1116 = vadd.f32 0.0, %v1115
      %v1117 = vpop.f32.mrb[0].mxu0
      %v1118 = vadd.f32 0.0, %v1117
      %1119 = vmatprep.mubr.bf16.mxu0 0
      %1120 = vmatmul.mubr.bf16.gmra.mrb[0].mxu0 %v994
      %v1121 = vpop.f32.mrb[0].mxu0
      %v1122 = vadd.f32 0.0, %v1121
      %v1123 = vpop.f32.mrb[0].mxu0
      %v1124 = vadd.f32 0.0, %v1123
      %v1125 = vpop.f32.mrb[0].mxu0
      %v1126 = vadd.f32 0.0, %v1125
      %v1127 = vpop.f32.mrb[0].mxu0
      %v1128 = vadd.f32 0.0, %v1127
      %1129 = vdwg.mxu0
      %v1130 = vpack.c.bf16 %v1116, %v1112
      %v1131 = vpack.c.bf16 %v1118, %v1114
      %v1132 = vpack.c.bf16 %v1126, %v1122
      %v1133 = vpack.c.bf16 %v1128, %v1124
      %v1138 = vunpack.c.l.b16 %v1130
      %v1139 = vunpack.c.l.b16 %v1131
      %v1140 = vunpack.c.h.b16 %v1130
      %v1141 = vunpack.c.h.b16 %v1131
      %v1142 = vunpack.c.l.b16 %v1132
      %v1143 = vunpack.c.l.b16 %v1133
      %v1144 = vunpack.c.h.b16 %v1132
      %v1145 = vunpack.c.h.b16 %v1133
      %v1146 = vpack.c.b16 %v1139, %v1138
      %v1147 = vpack.c.b16 %v1141, %v1140
      %v1148 = vpack.c.b16 %v1143, %v1142
      %v1149 = vpack.c.b16 %v1145, %v1144
      %s1154 = scalar_lea.vmem %s286, 32
      %1155 = vst [vmem:[%s1154] sm:$0xff] %v1146
      %1156 = vst [vmem:[%s1154 + $0x8] sm:$0xff] %v1147
      %1157 = vst [vmem:[%s1154 + $0x10] sm:$0xff] %v1148
      %1158 = vst [vmem:[%s1154 + $0x18] sm:$0xff] %v1149
      %p1159 = scmp.lt.s32.totalorder %s19, 1
      %s1160 = scalar_select %p1159, %s19, 1
      %s1161 = smul.addr %s1160, 16
      %s1162 = smul.addr %s1161, 4
      %s1163 = scalar_lea.vmem %s6, %s1162
      %p1164 = scmp.lt.s32.totalorder %s19, 1
      %s1165 = scalar_select %p1164, %s19, 1
      %s1166 = smul.addr %s1165, 16
      %s1167 = smul.addr %s1166, 4
      %s1168 = scalar_lea.vmem %s7, %s1167
      // Predicated region
      $region45: #{fsa_forward.2} parent=43 // pred_check
        %p1169 = pneg %p168
      $region46: #{fsa_forward.2} parent=43 // pred_check_branch
        %1171 = sbr.rel (%p1169) target = $region48
      $region47: #{fsa_forward.2} parent=43 // pred_region
        _
      $region48: #{fsa_forward.2} parent=43 // pred_fallthru
        _
      // Predicated region
      $region49: #{fsa_forward.2} parent=43 // pred_check
        %p1172 = pneg %p194
      $region50: #{fsa_forward.2} parent=43 // pred_check_branch
        %1174 = sbr.rel (%p1172) target = $region52
      $region51: #{fsa_forward.2} parent=43 // pred_region
        _
      $region52: #{fsa_forward.2} parent=43 // pred_fallthru
        _
    $region44: #{fsa_forward.2} parent=5 // pred_fallthru
      _
    %p1175 = scmp.le.s32.totalorder 2, %s14
    // Predicated region
    $region53: #{fsa_forward.2} parent=5 // pred_check
      %p1176 = pneg %p1175
    $region54: #{fsa_forward.2} parent=5 // pred_check_branch
      %1178 = sbr.rel (%p1176) target = $region56
    $region55: #{fsa_forward.2} parent=5 // pred_region
      %s1179 = ssub.s32 %s14, 2
      // Predicated region
      $region57: #{fsa_forward.2} parent=55 // pred_check
        %p1180 = pneg %p174
      $region58: #{fsa_forward.2} parent=55 // pred_check_branch
        %1182 = sbr.rel (%p1180) target = $region60
      $region59: #{fsa_forward.2} parent=55 // pred_region
        %p1183 = scmp.lt.s32.totalorder %s20, 1
        %s1184 = scalar_select %p1183, %s20, 1
        %s1185 = smul.addr %s1184, 16
        %s1186 = smul.addr %s1185, 4
        %s1187 = scalar_lea.vmem %s6, %s1186
      $region60: #{fsa_forward.2} parent=55 // pred_fallthru
        _
      // Predicated region
      $region61: #{fsa_forward.2} parent=55 // pred_check
        %p1188 = pneg %p200
      $region62: #{fsa_forward.2} parent=55 // pred_check_branch
        %1190 = sbr.rel (%p1188) target = $region64
      $region63: #{fsa_forward.2} parent=55 // pred_region
        %p1191 = scmp.lt.s32.totalorder %s20, 1
        %s1192 = scalar_select %p1191, %s20, 1
        %s1193 = smul.addr %s1192, 16
        %s1194 = smul.addr %s1193, 4
        %s1195 = scalar_lea.vmem %s7, %s1194
      $region64: #{fsa_forward.2} parent=55 // pred_fallthru
        _
    $region56: #{fsa_forward.2} parent=5 // pred_fallthru
      _
  $region6: #{fsa_forward.2} parent=0 // loop_footer
    %s18 = sadd.s32 1, %s14
  $region7: #{fsa_forward.2} parent=0 // loop_footer_branch
    %13 = sbr.rel target = $region3
  $region8: #{fsa_forward.2} parent=0 // loop_exit
    _

// kernel: fsa_forward.3
$region0: #{fsa_forward.3}
  #allocation0 [shape = 'u32[]', space=smem, size = 0x4, offset = 0x4, fixed_abs, tag = 'smem constant byte address 0x4 - core index']
  #allocation1 [shape = 'u32[144,128]{1,0:T(1,128)}', space=vmem, size = 0x12000, scoped, tag = 'internal scratch']
  %s0 = inlined_call_operand.vmem [shape: bf16[64,512], index: 0, kind: input, shape index: {}]
  %s1 = inlined_call_operand.vmem [shape: bf16[32,64], index: 1, kind: input, shape index: {}]
  %s2 = inlined_call_operand.vmem [shape: f32[32,512], index: 2, kind: output, shape index: {}]
  %s3 = sld [smem:[#allocation0]]
  $region98: #{fsa_forward.3} parent=0
    _
  %s5 = ssub.s32 1, %s3
  %s6 = scalar_select 0, %s5, %s3
  $region1: #{fsa_forward.3} parent=0
    #allocation2 [shape = 'u8[65536]{0}', space=vmem, size = 0x10000, scoped, tag = 'input window, operand 0']
    #allocation3 [shape = 'u8[65536]{0}', space=vmem, size = 0x10000, scoped, tag = 'output window, operand 0']
    loop: start=0, step=1, limit=4
    $region2: #{fsa_forward.3} parent=1 // loop_pre_header
      _
    $region3: #{fsa_forward.3} parent=1 // loop_header
      %s8 = sphi 0, %s12
      %p9 = scmp.ge.s32.totalorder %s8, 4
      %s18 = sphi 0, %s20
      %s21 = sphi 0, %s18
      %s22 = sphi 0, %s21
      %s38 = sphi 0, %s22
      %s42 = sphi 0, %s42
      %s44 = sphi 0, %s42
      %s45 = sphi 0, %s44
      %s59 = sphi 0, %s45
      %s65 = sphi 0, %s67
      %s68 = sphi 0, %s65
      %s69 = sphi 0, %s68
      %s85 = sphi 0, %s69
    $region4: #{fsa_forward.3} parent=1 // loop_header_branch
      %11 = sbr.rel (%p9) target = $region8
    $region5: #{fsa_forward.3} parent=1 // loop_body
      %s13 = ssub.s32 %s8, 1
      %s14 = ssub.s32 %s8, 2
      %s15 = sadd.s32 %s8, 1
      %s16 = ssub.s32 %s8, %s15
      %p17 = scmp.eq.s32.totalorder %s16, 0
      %s19 = sadd.s32 %s18, 1
      %s20 = scalar_select %p17, %s18, %s19
      %p23 = pneg %p17
      %p24 = scmp.eq.s32.totalorder %s8, 1
      %p25 = por %p23, %p24
      %p26 = scmp.ne.s32.totalorder %s18, %s21
      %p27 = scmp.eq.s32.totalorder %s8, 0
      %p28 = por %p26, %p27
      %p29 = scmp.ne.s32.totalorder %s18, %s21
      %p30 = scmp.eq.s32.totalorder %s13, 1
      %p31 = por %p29, %p30
      %p32 = scmp.ne.s32.totalorder %s21, %s22
      %p33 = scmp.eq.s32.totalorder %s13, 0
      %p34 = por %p32, %p33
      %p35 = scmp.ne.s32.totalorder %s21, %s22
      %p36 = scmp.eq.s32.totalorder %s14, 1
      %p37 = por %p35, %p36
      %p39 = scmp.ne.s32.totalorder %s22, %s38
      %p40 = scmp.eq.s32.totalorder %s14, 0
      %p41 = por %p39, %p40
      %s43 = sadd.s32 %s42, 1
      %p46 = scmp.eq.s32.totalorder %s8, 1
      %p47 = scmp.ne.s32.totalorder %s42, %s44
      %p48 = scmp.eq.s32.totalorder %s8, 0
      %p49 = por %p47, %p48
      %p50 = scmp.ne.s32.totalorder %s42, %s44
      %p51 = scmp.eq.s32.totalorder %s13, 1
      %p52 = por %p50, %p51
      %p53 = scmp.ne.s32.totalorder %s44, %s45
      %p54 = scmp.eq.s32.totalorder %s13, 0
      %p55 = por %p53, %p54
      %p56 = scmp.ne.s32.totalorder %s44, %s45
      %p57 = scmp.eq.s32.totalorder %s14, 1
      %p58 = por %p56, %p57
      %p60 = scmp.ne.s32.totalorder %s45, %s59
      %p61 = scmp.eq.s32.totalorder %s14, 0
      %p62 = por %p60, %p61
      %s63 = ssub.s32 %s8, %s15
      %p64 = scmp.eq.s32.totalorder %s63, 0
      %s66 = sadd.s32 %s65, 1
      %s67 = scalar_select %p64, %s65, %s66
      %p70 = pneg %p64
      %p71 = scmp.eq.s32.totalorder %s8, 1
      %p72 = por %p70, %p71
      %p73 = scmp.ne.s32.totalorder %s65, %s68
      %p74 = scmp.eq.s32.totalorder %s8, 0
      %p75 = por %p73, %p74
      %p76 = scmp.ne.s32.totalorder %s65, %s68
      %p77 = scmp.eq.s32.totalorder %s13, 1
      %p78 = por %p76, %p77
      %p79 = scmp.ne.s32.totalorder %s68, %s69
      %p80 = scmp.eq.s32.totalorder %s13, 0
      %p81 = por %p79, %p80
      %p82 = scmp.ne.s32.totalorder %s68, %s69
      %p83 = scmp.eq.s32.totalorder %s14, 1
      %p84 = por %p82, %p83
      %p86 = scmp.ne.s32.totalorder %s69, %s85
      %p87 = scmp.eq.s32.totalorder %s14, 0
      %p88 = por %p86, %p87
      %p89 = scmp.le.s32.totalorder 1, %s8
      %p90 = scmp.lt.s32.totalorder %s8, 3
      %p91 = pnand %p89, %p90
      %p92 = pneg %p91
      // Predicated region
      $region9: #{fsa_forward.3} parent=5 // pred_check
        _
      $region10: #{fsa_forward.3} parent=5 // pred_check_branch
        %94 = sbr.rel (%p91) target = $region12
      $region11: #{fsa_forward.3} parent=5 // pred_region
        %s95 = ssub.s32 %s8, 1
        // Predicated region
        $region13: #{fsa_forward.3} parent=11 // pred_check
          %p96 = pneg %p55
        $region14: #{fsa_forward.3} parent=11 // pred_check_branch
          %98 = sbr.rel (%p96) target = $region16
        $region15: #{fsa_forward.3} parent=11 // pred_region
          _
        $region16: #{fsa_forward.3} parent=11 // pred_fallthru
          _
      $region12: #{fsa_forward.3} parent=5 // pred_fallthru
        _
      %p99 = scmp.lt.s32.totalorder %s8, 2
      // Predicated region
      $region17: #{fsa_forward.3} parent=5 // pred_check
        %p100 = pneg %p99
      $region18: #{fsa_forward.3} parent=5 // pred_check_branch
        %102 = sbr.rel (%p100) target = $region20
      $region19: #{fsa_forward.3} parent=5 // pred_region
        // Predicated region
        $region21: #{fsa_forward.3} parent=19 // pred_check
          %p103 = pneg %p28
        $region22: #{fsa_forward.3} parent=19 // pred_check_branch
          %105 = sbr.rel (%p103) target = $region24
        $region23: #{fsa_forward.3} parent=19 // pred_region
          %s106 = sand.u32 %s18, 1
          %s107 = sand.u32 %s18, 1
          %s108 = smul.addr %s107, 64
          %s109 = scalar_lea.vmem [#allocation2], %s108
          %s110 = smul.u32 2, %s8
          %s111 = smul.addr %s110, 4
          %s112 = scalar_lea.vmem %s0, %s111
          // Predicated region
          $region25: #{fsa_forward.3} parent=23 // pred_check
            _
          $region26: #{fsa_forward.3} parent=23 // pred_check_branch
            %114 = sbr.rel (0) target = $region28
          $region27: #{fsa_forward.3} parent=23 // pred_region
            // Predicated region
            $region29: #{fsa_forward.3} parent=27 // pred_check
              _
            $region30: #{fsa_forward.3} parent=27 // pred_check_branch
              %116 = sbr.rel (0) target = $region32
            $region31: #{fsa_forward.3} parent=27 // pred_region
              // Predicated region
              $region44: #{fsa_forward.3} parent=31 // pred_check
                _
              $region45: #{fsa_forward.3} parent=31 // pred_check_branch
                %145 = sbr.rel (0) target = $region47
              $region46: #{fsa_forward.3} parent=31 // pred_region
                loop: start=0, step=1, limit=1
                $region48: #{fsa_forward.3} parent=46 // loop_pre_header
                  _
                $region49: #{fsa_forward.3} parent=46 // loop_header
                  %s147 = sphi 0, %s151
                  %p148 = scmp.ge.s32.totalorder %s147, 1
                  %s152 = sphi %s112, %s112
                  %s153 = sphi %s109, %s109
                $region50: #{fsa_forward.3} parent=46 // loop_header_branch
                  %150 = sbr.rel (%p148) target = $region54
                $region51: #{fsa_forward.3} parent=46 // loop_body
                  %v154 = vld [vmem:[%s152] sm:$0xff]
                  %155 = vst [vmem:[%s153] sm:$0xff] %v154
                  %v156 = vld [vmem:[%s152 + $0x10] sm:$0xff]
                  %157 = vst [vmem:[%s153 + $0x8] sm:$0xff] %v156
                  %v158 = vld [vmem:[%s152 + $0x20] sm:$0xff]
                  %159 = vst [vmem:[%s153 + $0x10] sm:$0xff] %v158
                  %v160 = vld [vmem:[%s152 + $0x30] sm:$0xff]
                  %161 = vst [vmem:[%s153 + $0x18] sm:$0xff] %v160
                  %v162 = vld [vmem:[%s152 + $0x40] sm:$0xff]
                  %163 = vst [vmem:[%s153 + $0x20] sm:$0xff] %v162
                  %v164 = vld [vmem:[%s152 + $0x50] sm:$0xff]
                  %165 = vst [vmem:[%s153 + $0x28] sm:$0xff] %v164
                  %v166 = vld [vmem:[%s152 + $0x60] sm:$0xff]
                  %167 = vst [vmem:[%s153 + $0x30] sm:$0xff] %v166
                  %v168 = vld [vmem:[%s152 + $0x70] sm:$0xff]
                  %169 = vst [vmem:[%s153 + $0x38] sm:$0xff] %v168
                $region52: #{fsa_forward.3} parent=46 // loop_footer
                  %s151 = sadd.s32 1, %s147
                $region53: #{fsa_forward.3} parent=46 // loop_footer_branch
                  %146 = sbr.rel target = $region49
                $region54: #{fsa_forward.3} parent=46 // loop_exit
                  _
              $region47: #{fsa_forward.3} parent=31 // pred_fallthru
                _
              // Predicated region
              $region55: #{fsa_forward.3} parent=31 // pred_check
                _
              $region56: #{fsa_forward.3} parent=31 // pred_check_branch
                %171 = sbr.rel target = $region58
              $region57: #{fsa_forward.3} parent=31 // pred_region
                _
              $region58: #{fsa_forward.3} parent=31 // pred_fallthru
                _
            $region32: #{fsa_forward.3} parent=27 // pred_fallthru
              _
            // Predicated region
            $region33: #{fsa_forward.3} parent=27 // pred_check
              _
            $region34: #{fsa_forward.3} parent=27 // pred_check_branch
              %118 = sbr.rel target = $region36
            $region35: #{fsa_forward.3} parent=27 // pred_region
              loop: start=0, step=1, limit=1
              $region37: #{fsa_forward.3} parent=35 // loop_pre_header
                _
              $region38: #{fsa_forward.3} parent=35 // loop_header
                %s121 = sphi 0, %s125
                %p122 = scmp.ge.s32.totalorder %s121, 1
                %s126 = sphi %s112, %s112
                %s127 = sphi %s109, %s109
              $region39: #{fsa_forward.3} parent=35 // loop_header_branch
                %124 = sbr.rel (%p122) target = $region43
              $region40: #{fsa_forward.3} parent=35 // loop_body
                %v128 = vld [vmem:[%s126] sm:$0xff]
                %129 = vst [vmem:[%s127] sm:$0xff] %v128
                %v130 = vld [vmem:[%s126 + $0x10] sm:$0xff]
                %131 = vst [vmem:[%s127 + $0x8] sm:$0xff] %v130
                %v132 = vld [vmem:[%s126 + $0x20] sm:$0xff]
                %133 = vst [vmem:[%s127 + $0x10] sm:$0xff] %v132
                %v134 = vld [vmem:[%s126 + $0x30] sm:$0xff]
                %135 = vst [vmem:[%s127 + $0x18] sm:$0xff] %v134
                %v136 = vld [vmem:[%s126 + $0x40] sm:$0xff]
                %137 = vst [vmem:[%s127 + $0x20] sm:$0xff] %v136
                %v138 = vld [vmem:[%s126 + $0x50] sm:$0xff]
                %139 = vst [vmem:[%s127 + $0x28] sm:$0xff] %v138
                %v140 = vld [vmem:[%s126 + $0x60] sm:$0xff]
                %141 = vst [vmem:[%s127 + $0x30] sm:$0xff] %v140
                %v142 = vld [vmem:[%s126 + $0x70] sm:$0xff]
                %143 = vst [vmem:[%s127 + $0x38] sm:$0xff] %v142
              $region41: #{fsa_forward.3} parent=35 // loop_footer
                %s125 = sadd.s32 1, %s121
              $region42: #{fsa_forward.3} parent=35 // loop_footer_branch
                %120 = sbr.rel target = $region38
              $region43: #{fsa_forward.3} parent=35 // loop_exit
                _
            $region36: #{fsa_forward.3} parent=27 // pred_fallthru
              _
          $region28: #{fsa_forward.3} parent=23 // pred_fallthru
            _
          %172 = vnop
        $region24: #{fsa_forward.3} parent=19 // pred_fallthru
          _
      $region20: #{fsa_forward.3} parent=5 // pred_fallthru
        _
      %p173 = scmp.le.s32.totalorder 1, %s8
      %p174 = scmp.lt.s32.totalorder %s8, 3
      %p175 = pnand %p173, %p174
      %p176 = pneg %p175
      // Predicated region
      $region59: #{fsa_forward.3} parent=5 // pred_check
        _
      $region60: #{fsa_forward.3} parent=5 // pred_check_branch
        %178 = sbr.rel (%p175) target = $region62
      $region61: #{fsa_forward.3} parent=5 // pred_region
        %s179 = ssub.s32 %s8, 1
        %s180 = sand.u32 %s21, 1
        %s181 = sand.u32 %s21, 1
        %s182 = smul.addr %s181, 64
        %s183 = scalar_lea.vmem [#allocation2], %s182
        // Predicated region
        $region63: #{fsa_forward.3} parent=61 // pred_check
          %p184 = pneg %p34
        $region64: #{fsa_forward.3} parent=61 // pred_check_branch
          %186 = sbr.rel (%p184) target = $region66
        $region65: #{fsa_forward.3} parent=61 // pred_region
          _
        $region66: #{fsa_forward.3} parent=61 // pred_fallthru
          _
        %s187 = sand.u32 %s21, 1
        %s188 = sand.u32 %s21, 1
        %s189 = smul.addr %s188, 64
        %s190 = scalar_lea.vmem [#allocation2], %s189
        %p191 = pneg %p34
        %p192 = pneg %p31
        %p193 = pneg %p55
        %p194 = pneg %p52
        %p195 = pneg %p81
        %p196 = pneg %p78
        %s197 = sand.u32 %s68, 1
        %s198 = sand.u32 %s68, 1
        %s199 = smul.addr %s198, 64
        %s200 = scalar_lea.vmem [#allocation3], %s199
        %s201 = smul.u32 2, %s13
        %s202 = smul.u32 2, %s13
        %v204 = vld [vmem:[%s1] sm:$0xf]
        %v205 = vld [vmem:[%s1 + $0x4] sm:$0xf]
        %v206 = vld [vmem:[%s1 + $0x8] sm:$0xf]
        %v207 = vld [vmem:[%s1 + $0xc] sm:$0xf]
        %v208 = vld [vmem:[%s183] sm:$0xff]
        %v209 = vld [vmem:[%s183 + $0x8] sm:$0xff]
        %v210 = vld [vmem:[%s183 + $0x10] sm:$0xff]
        %v211 = vld [vmem:[%s183 + $0x18] sm:$0xff]
        %v212 = vld [vmem:[%s183 + $0x20] sm:$0xff]
        %v213 = vld [vmem:[%s183 + $0x28] sm:$0xff]
        %v214 = vld [vmem:[%s183 + $0x30] sm:$0xff]
        %v215 = vld [vmem:[%s183 + $0x38] sm:$0xff]
        %v220 = vunpack.c.l.b16 %v204
        %v221 = vunpack.c.l.b16 %v205
        %v222 = vunpack.c.l.b16 %v206
        %v223 = vunpack.c.l.b16 %v207
        %v224 = vpack.c.b16 %v221, %v220
        %v225 = vpack.c.b16 %v223, %v222
        %v234 = vunpack.c.l.b16 %v208
        %v235 = vunpack.c.h.b16 %v208
        %v236 = vunpack.c.l.b16 %v209
        %v237 = vunpack.c.h.b16 %v209
        %v238 = vunpack.c.l.b16 %v210
        %v239 = vunpack.c.h.b16 %v210
        %v240 = vunpack.c.l.b16 %v211
        %v241 = vunpack.c.h.b16 %v211
        %v242 = vunpack.c.l.b16 %v212
        %v243 = vunpack.c.h.b16 %v212
        %v244 = vunpack.c.l.b16 %v213
        %v245 = vunpack.c.h.b16 %v213
        %v246 = vunpack.c.l.b16 %v214
        %v247 = vunpack.c.h.b16 %v214
        %v248 = vunpack.c.l.b16 %v215
        %v249 = vunpack.c.h.b16 %v215
        %v250 = vpack.c.b16 %v236, %v234
        %v251 = vpack.c.b16 %v237, %v235
        %v252 = vpack.c.b16 %v240, %v238
        %v253 = vpack.c.b16 %v241, %v239
        %v254 = vpack.c.b16 %v244, %v242
        %v255 = vpack.c.b16 %v245, %v243
        %v256 = vpack.c.b16 %v248, %v246
        %v257 = vpack.c.b16 %v249, %v247
        %vm266 = vcmask 523264
        %v268 = vsel %vm266, %v224, 0
        %v271 = vsel %vm266, %v225, 0
        %273 = vmatprep.subr.bf16.mxu0 %v251
        %274 = vmatpush1.bf16.msra.mxu0 %v250
        %275 = vmatprep.subr.bf16.mxu0 %v253
        %276 = vmatpush1.bf16.msra.mxu0 %v252
        %277 = vmatprep.subr.bf16.mxu0 %v255
        %278 = vmatpush1.bf16.msra.mxu0 %v254
        %279 = vmatprep.subr.bf16.mxu0 %v257
        %280 = vmatpush1.bf16.msra.mxu0 %v256
        %281 = vmatprep.subr.bf16.mxu0 0
        %282 = vmatpush1.bf16.msra.mxu0 0
        %283 = vmatprep.subr.bf16.mxu0 0
        %284 = vmatpush1.bf16.msra.mxu0 0
        %285 = vmatprep.subr.bf16.mxu0 0
        %286 = vmatpush1.bf16.msra.mxu0 0
        %287 = vmatprep.subr.bf16.mxu0 0
        %288 = vmatpush1.bf16.msra.mxu0 0
        %289 = vmatprep.subr.bf16.mxu0 0
        %290 = vmatpush1.bf16.msra.mxu0 0
        %291 = vmatprep.subr.bf16.mxu0 0
        %292 = vmatpush1.bf16.msra.mxu0 0
        %293 = vmatprep.subr.bf16.mxu0 0
        %294 = vmatpush1.bf16.msra.mxu0 0
        %295 = vmatprep.subr.bf16.mxu0 0
        %296 = vmatpush1.bf16.msra.mxu0 0
        %297 = vmatprep.subr.bf16.mxu0 0
        %298 = vmatpush1.bf16.msra.mxu0 0
        %299 = vmatprep.subr.bf16.mxu0 0
        %300 = vmatpush1.bf16.msra.mxu0 0
        %301 = vmatprep.subr.bf16.mxu0 0
        %302 = vmatpush1.bf16.msra.mxu0 0
        %303 = vmatprep.subr.bf16.mxu0 0
        %304 = vmatpush1.bf16.msra.mxu0 0
        %305 = vmatprep.mubr.bf16.mxu0 0
        %306 = vmatmul.mubr.bf16.gmra.mrb[0].mxu0 %v268
        %v307 = vpop.f32.mrb[0].mxu0
        %v308 = vadd.f32 0.0, %v307
        %v309 = vpop.f32.mrb[0].mxu0
        %v310 = vadd.f32 0.0, %v309
        %v311 = vpop.f32.mrb[0].mxu0
        %v312 = vadd.f32 0.0, %v311
        %v313 = vpop.f32.mrb[0].mxu0
        %v314 = vadd.f32 0.0, %v313
        %315 = vmatprep.mubr.bf16.mxu0 0
        %316 = vmatmul.mubr.bf16.gmra.mrb[0].mxu0 %v271
        %v317 = vpop.f32.mrb[0].mxu0
        %v318 = vadd.f32 0.0, %v317
        %v319 = vpop.f32.mrb[0].mxu0
        %v320 = vadd.f32 0.0, %v319
        %v321 = vpop.f32.mrb[0].mxu0
        %v322 = vadd.f32 0.0, %v321
        %v323 = vpop.f32.mrb[0].mxu0
        %v324 = vadd.f32 0.0, %v323
        %325 = vdwg.mxu0
        %326 = vst [vmem:[%s200] sm:$0xff] %v308
        %327 = vst [vmem:[%s200 + $0x8] sm:$0xff] %v310
        %328 = vst [vmem:[%s200 + $0x10] sm:$0xff] %v312
        %329 = vst [vmem:[%s200 + $0x18] sm:$0xff] %v314
        %330 = vst [vmem:[%s200 + $0x20] sm:$0xff] %v318
        %331 = vst [vmem:[%s200 + $0x28] sm:$0xff] %v320
        %332 = vst [vmem:[%s200 + $0x30] sm:$0xff] %v322
        %333 = vst [vmem:[%s200 + $0x38] sm:$0xff] %v324
        %s334 = sand.u32 %s68, 1
        %s335 = sand.u32 %s68, 1
        %s336 = smul.addr %s335, 64
        %s337 = scalar_lea.vmem [#allocation3], %s336
        // Predicated region
        $region67: #{fsa_forward.3} parent=61 // pred_check
          %p338 = pneg %p78
        $region68: #{fsa_forward.3} parent=61 // pred_check_branch
          %340 = sbr.rel (%p338) target = $region70
        $region69: #{fsa_forward.3} parent=61 // pred_region
          %s341 = smul.u32 2, %s13
          %s342 = smul.addr %s341, 8
          %s343 = scalar_lea.vmem %s2, %s342
          // Predicated region
          $region71: #{fsa_forward.3} parent=69 // pred_check
            _
          $region72: #{fsa_forward.3} parent=69 // pred_check_branch
            %345 = sbr.rel (0) target = $region74
          $region73: #{fsa_forward.3} parent=69 // pred_region
            // Predicated region
            $region75: #{fsa_forward.3} parent=73 // pred_check
              _
            $region76: #{fsa_forward.3} parent=73 // pred_check_branch
              %347 = sbr.rel (0) target = $region78
            $region77: #{fsa_forward.3} parent=73 // pred_region
              loop: start=0, step=1, limit=1
              $region79: #{fsa_forward.3} parent=77 // loop_pre_header
                _
              $region80: #{fsa_forward.3} parent=77 // loop_header
                %s349 = sphi 0, %s353
                %p350 = scmp.ge.s32.totalorder %s349, 1
                %s354 = sphi %s337, %s337
                %s355 = sphi %s343, %s343
              $region81: #{fsa_forward.3} parent=77 // loop_header_branch
                %352 = sbr.rel (%p350) target = $region85
              $region82: #{fsa_forward.3} parent=77 // loop_body
                %v356 = vld [vmem:[%s354] sm:$0xff]
                %357 = vst [vmem:[%s355] sm:$0xff] %v356
                %v358 = vld [vmem:[%s354 + $0x8] sm:$0xff]
                %359 = vst [vmem:[%s355 + $0x8] sm:$0xff] %v358
                %v360 = vld [vmem:[%s354 + $0x10] sm:$0xff]
                %361 = vst [vmem:[%s355 + $0x20] sm:$0xff] %v360
                %v362 = vld [vmem:[%s354 + $0x18] sm:$0xff]
                %363 = vst [vmem:[%s355 + $0x28] sm:$0xff] %v362
                %v364 = vld [vmem:[%s354 + $0x20] sm:$0xff]
                %365 = vst [vmem:[%s355 + $0x40] sm:$0xff] %v364
                %v366 = vld [vmem:[%s354 + $0x28] sm:$0xff]
                %367 = vst [vmem:[%s355 + $0x48] sm:$0xff] %v366
                %v368 = vld [vmem:[%s354 + $0x30] sm:$0xff]
                %369 = vst [vmem:[%s355 + $0x60] sm:$0xff] %v368
                %v370 = vld [vmem:[%s354 + $0x38] sm:$0xff]
                %371 = vst [vmem:[%s355 + $0x68] sm:$0xff] %v370
              $region83: #{fsa_forward.3} parent=77 // loop_footer
                %s353 = sadd.s32 1, %s349
              $region84: #{fsa_forward.3} parent=77 // loop_footer_branch
                %348 = sbr.rel target = $region80
              $region85: #{fsa_forward.3} parent=77 // loop_exit
                _
            $region78: #{fsa_forward.3} parent=73 // pred_fallthru
              _
            // Predicated region
            $region86: #{fsa_forward.3} parent=73 // pred_check
              _
            $region87: #{fsa_forward.3} parent=73 // pred_check_branch
              %373 = sbr.rel target = $region89
            $region88: #{fsa_forward.3} parent=73 // pred_region
              _
            $region89: #{fsa_forward.3} parent=73 // pred_fallthru
              _
          $region74: #{fsa_forward.3} parent=69 // pred_fallthru
            _
          %374 = vnop
        $region70: #{fsa_forward.3} parent=61 // pred_fallthru
          _
      $region62: #{fsa_forward.3} parent=5 // pred_fallthru
        _
      %p375 = scmp.le.s32.totalorder 2, %s8
      // Predicated region
      $region90: #{fsa_forward.3} parent=5 // pred_check
        %p376 = pneg %p375
      $region91: #{fsa_forward.3} parent=5 // pred_check_branch
        %378 = sbr.rel (%p376) target = $region93
      $region92: #{fsa_forward.3} parent=5 // pred_region
        %s379 = ssub.s32 %s8, 2
        // Predicated region
        $region94: #{fsa_forward.3} parent=92 // pred_check
          %p380 = pneg %p84
        $region95: #{fsa_forward.3} parent=92 // pred_check_branch
          %382 = sbr.rel (%p380) target = $region97
        $region96: #{fsa_forward.3} parent=92 // pred_region
          %s383 = sand.u32 %s69, 1
          %s384 = sand.u32 %s69, 1
          %s385 = smul.addr %s384, 64
          %s386 = scalar_lea.vmem [#allocation3], %s385
        $region97: #{fsa_forward.3} parent=92 // pred_fallthru
          _
      $region93: #{fsa_forward.3} parent=5 // pred_fallthru
        _
    $region6: #{fsa_forward.3} parent=1 // loop_footer
      %s12 = sadd.s32 1, %s8
    $region7: #{fsa_forward.3} parent=1 // loop_footer_branch
      %7 = sbr.rel target = $region3
    $region8: #{fsa_forward.3} parent=1 // loop_exit
      _

</llo_original>
